<compile_context>
chip_gen: v5e
topology: v5e:2x2
jax: 0.10.0
libtpu: 0.0.40
codegen_flags: <defaults>
</compile_context>

<pallas_src>
import functools

import jax
import jax.numpy as jnp
import numpy as np
from jax.experimental import pallas as pl
from jax.experimental.pallas import tpu as pltpu

LANE = 128
SUBLANE = 8


def lstm_dir_kernel(x_ref,     # (T*Bp, Ep)   bf16  embedded tokens, time-major, flattened
                    wih_ref,   # (1, Ep, 4H)  bf16  input-projection weights for this direction
                    bih_ref,   # (1, 1, 4H)   f32   fused bias (b_ih + b_hh)
                    whh_ref,   # (1, 4H, 4H)  bf16  recurrent weights; only rows [3H:4H] nonzero
                    fcw_ref,   # (1, 4H, Cp)  bf16  fc weights; only rows [3H:4H] nonzero
                    fcb_ref,   # (1, 1, Cp)   f32   fc bias (direction 0) or zeros (direction 1)
                    out_ref,   # (1, Bp, Cp)  f32   this direction's partial logits
                    gin_ref,   # (T*Bp, 4H)   f32   VMEM scratch: precomputed gate inputs
                    *, act_dtype):
    G = whh_ref.shape[-1]          # packed gate width = 4*H (one 128-lane slab)
    H = G // 4
    Bp = out_ref.shape[1]
    T = x_ref.shape[0] // Bp
    d = pl.program_id(0)           # 0 = forward chain, 1 = backward chain

    # Prologue: input projections for every timestep of THIS direction in one
    # fused MXU matmul, parked in VMEM scratch and read back per step as
    # aligned 8-sublane x 128-lane views.
    gin_ref[...] = (jnp.dot(x_ref[...], wih_ref[0],
                            preferred_element_type=jnp.float32) + bih_ref[0])

    whh = whh_ref[0]                                             # (4H, 4H) bf16
    lane = jax.lax.broadcasted_iota(jnp.int32, (Bp, G), 1)       # hoisted out of the loop
    is_g = jnp.logical_and(lane >= 2 * H, lane < 3 * H)          # tanh ("g") lanes

    # Packed-lane layout: activations are [ i | f | g | o ]; the cell state c
    # lives in the f-block (lanes [H:2H]) and the hidden state h in the
    # o-block (lanes [3H:4H]).  Non-home lanes hold bounded garbage that the
    # zero rows of whh / fcw keep out of every real result.
    c = jnp.zeros((Bp, G), jnp.float32)
    h = jnp.zeros((Bp, G), jnp.float32)

    # T is small and static -> unrolled recurrence.  Forward reads time t,
    # backward reads time T-1-t (dynamic, 8-row-aligned slice).
    for t in range(T):
        row = jnp.where(d == 0, t * Bp, (T - 1 - t) * Bp)
        row = pl.multiple_of(row, Bp)
        gin_t = gin_ref[pl.ds(row, Bp), :]                       # (Bp, 4H) f32

        g = gin_t + jnp.dot(h.astype(jnp.bfloat16), whh,
                            preferred_element_type=jnp.float32)  # (Bp, 4H) f32

        # One EUP pass for all 4 gates: sigmoid(x) = 0.5 * (1 + tanh(x/2)).
        # EUP dtype is generation-gated (bf16 on v6e/v7x, f32 on v5e).
        ga = g.astype(act_dtype)
        tt = jnp.tanh(jnp.where(is_g, ga, 0.5 * ga))
        act = jnp.where(is_g, tt, 0.5 * (tt + 1.0)).astype(jnp.float32)  # [i|f|g|o]

        # XLU rolls align the sub-slabs (no per-gate cross-lane extracts):
        #   act * roll(act, 2H) puts i*g in blocks 0 AND 2, so a further roll
        #   by H lands i*g in the f/c block under either rotate convention;
        #   roll(tanh(c), 2H) (self-inverse) moves c's block to o's block.
        ig = act * pltpu.roll(act, 2 * H, axis=1)
        c = act * c + pltpu.roll(ig, H, axis=1)            # lanes [H:2H]  = f*c + i*g
        h = act * pltpu.roll(jnp.tanh(c), 2 * H, axis=1)   # lanes [3H:4H] = o*tanh(c)

    # Partial fc for this direction (lane-dense Cp output -> unmasked stores).
    out = (jnp.dot(h.astype(jnp.bfloat16), fcw_ref[0],
                   preferred_element_type=jnp.float32) + fcb_ref[0])
    out_ref[0] = out.astype(out_ref.dtype)


def select_activation_dtype():
    """bf16 gate nonlinearities only on chips with a bf16 EUP/VPU (v6e, v7x)."""
    try:
        kind = jax.devices()[0].device_kind.lower()
    except Exception:
        return jnp.float32
    return jnp.bfloat16 if ("v6" in kind or "v7" in kind) else jnp.float32


def lstm_classifier_forward(tokens, params, act_dtype=None):
    """tokens: (B, T) int32.  Returns logits (B, num_classes) float32."""
    if act_dtype is None:
        act_dtype = select_activation_dtype()

    B, T = tokens.shape
    E = params["embedding"].shape[1]
    H = params["w_hh_f"].shape[1]
    C = params["fc_b"].shape[0]
    G = 4 * H
    assert G % LANE == 0, "packed-gate kernel assumes 4*hidden_dim % 128 == 0"

    Ep = ((E + LANE - 1) // LANE) * LANE
    Cp = ((C + LANE - 1) // LANE) * LANE
    Bp = ((B + SUBLANE - 1) // SUBLANE) * SUBLANE

    # TODO(synk): embedding gather kept in plain JAX (data-dependent row gather
    # does not map to a rectangular BlockSpec; would need a manual DMA gather).
    x_emb = jnp.take(params["embedding"], tokens, axis=0)          # (B, T, E)
    x_tm = jnp.transpose(x_emb, (1, 0, 2)).astype(jnp.float32)     # (T, B, E)
    x_tm = jnp.pad(x_tm, ((0, 0), (0, Bp - B), (0, Ep - E)))       # (T, Bp, Ep)
    x2d = x_tm.reshape(T * Bp, Ep).astype(jnp.bfloat16)            # host-side flatten

    def pack_dir(w_ih, w_hh, b_ih, b_hh, fc_rows, with_bias):
        # Gates stay in PyTorch order [i,f,g,o] across one 4H-lane slab.
        wih = jnp.zeros((Ep, G), jnp.float32).at[:E, :].set(w_ih.T)
        bih = (b_ih + b_hh)[None, :]                               # (1, G)
        # h lives in the o-block -> only rows [3H:4H] of whh / fcw are real.
        whh = jnp.zeros((G, G), jnp.float32).at[3 * H:, :].set(w_hh.T)
        fcw = jnp.zeros((G, Cp), jnp.float32).at[3 * H:, :C].set(fc_rows)
        fcb = jnp.zeros((1, Cp), jnp.float32)
        if with_bias:
            fcb = fcb.at[0, :C].set(params["fc_b"])
        return wih, bih, whh, fcw, fcb

    fcw_t = params["fc_w"].T                                       # (2H, C)
    pf = pack_dir(params["w_ih_f"], params["w_hh_f"], params["b_ih_f"],
                  params["b_hh_f"], fcw_t[:H], True)
    pb = pack_dir(params["w_ih_b"], params["w_hh_b"], params["b_ih_b"],
                  params["b_hh_b"], fcw_t[H:], False)

    wih = jnp.stack([pf[0], pb[0]]).astype(jnp.bfloat16)           # (2, Ep, G)
    bih = jnp.stack([pf[1], pb[1]]).astype(jnp.float32)            # (2, 1, G)
    whh = jnp.stack([pf[2], pb[2]]).astype(jnp.bfloat16)           # (2, G, G)
    fcw = jnp.stack([pf[3], pb[3]]).astype(jnp.bfloat16)           # (2, G, Cp)
    fcb = jnp.stack([pf[4], pb[4]]).astype(jnp.float32)            # (2, 1, Cp)

    kernel = functools.partial(lstm_dir_kernel, act_dtype=act_dtype)

    out_p = pl.pallas_call(
        kernel,
        out_shape=jax.ShapeDtypeStruct((2, Bp, Cp), jnp.float32),
        grid=(2,),                         # LSTM direction; parallel -> 2nd TC on v7x
        in_specs=[
            pl.BlockSpec((T * Bp, Ep), lambda d: (0, 0)),
            pl.BlockSpec((1, Ep, G), lambda d: (d, 0, 0)),
            pl.BlockSpec((1, 1, G), lambda d: (d, 0, 0)),
            pl.BlockSpec((1, G, G), lambda d: (d, 0, 0)),
            pl.BlockSpec((1, G, Cp), lambda d: (d, 0, 0)),
            pl.BlockSpec((1, 1, Cp), lambda d: (d, 0, 0)),
        ],
        out_specs=pl.BlockSpec((1, Bp, Cp), lambda d: (d, 0, 0)),
        scratch_shapes=[pltpu.VMEM((T * Bp, G), jnp.float32)],
        compiler_params=pltpu.CompilerParams(
            dimension_semantics=("parallel",)),
    )(x2d, wih, bih, whh, fcw, fcb)

    # fc(cat([h_fwd, h_bwd])) == fwd partial + bwd partial (bias added once).
    return (out_p[0] + out_p[1])[:B, :C]


def reference_forward(tokens, params):
    """Pure-JAX f32 reference matching torch.nn.LSTM(batch_first, bidirectional)."""
    H = params["w_hh_f"].shape[1]
    B = tokens.shape[0]
    x = jnp.take(params["embedding"], tokens, axis=0)
    x_tm = jnp.transpose(x, (1, 0, 2)).astype(jnp.float32)         # (T, B, E)

    def run_dir(xs, w_ih, w_hh, b_ih, b_hh):
        def step(carry, x_t):
            h, c = carry
            g = x_t @ w_ih.T + h @ w_hh.T + b_ih + b_hh
            i = jax.nn.sigmoid(g[:, :H])
            f = jax.nn.sigmoid(g[:, H:2 * H])
            gg = jnp.tanh(g[:, 2 * H:3 * H])
            o = jax.nn.sigmoid(g[:, 3 * H:])
            c = f * c + i * gg
            h = o * jnp.tanh(c)
            return (h, c), None
        init = (jnp.zeros((B, H), jnp.float32), jnp.zeros((B, H), jnp.float32))
        (h, _), _ = jax.lax.scan(step, init, xs)
        return h

    h_f = run_dir(x_tm, params["w_ih_f"], params["w_hh_f"],
                  params["b_ih_f"], params["b_hh_f"])
    h_b = run_dir(x_tm[::-1], params["w_ih_b"], params["w_hh_b"],
                  params["b_ih_b"], params["b_hh_b"])
    hidden = jnp.concatenate([h_f, h_b], axis=1)   # torch.cat((hidden[-2], hidden[-1]), 1)
    return hidden @ params["fc_w"].T + params["fc_b"]


def init_params(key, vocab_size, embed_dim, hidden_dim, num_classes):
    ks = jax.random.split(key, 12)
    H, E, V, C = hidden_dim, embed_dim, vocab_size, num_classes
    bound = 1.0 / np.sqrt(H)
    fcb = 1.0 / np.sqrt(2 * H)

    def u(k, shape, b):
        return jax.random.uniform(k, shape, jnp.float32, -b, b)

    emb = jax.random.normal(ks[0], (V, E), jnp.float32)
    emb = emb.at[0].set(0.0)   # padding_idx=0

    return {
        "embedding": emb,
        "w_ih_f": u(ks[1], (4 * H, E), bound),
        "w_hh_f": u(ks[2], (4 * H, H), bound),
        "b_ih_f": u(ks[3], (4 * H,), bound),
        "b_hh_f": u(ks[4], (4 * H,), bound),
        "w_ih_b": u(ks[5], (4 * H, E), bound),
        "w_hh_b": u(ks[6], (4 * H, H), bound),
        "b_ih_b": u(ks[7], (4 * H,), bound),
        "b_hh_b": u(ks[8], (4 * H,), bound),
        "fc_w":   u(ks[9], (C, 2 * H), fcb),
        "fc_b":   u(ks[10], (C,), fcb),
    }


if __name__ == "__main__":
    VOCAB, EMBED, HIDDEN, CLASSES = 50, 32, 32, 4
    B, T = 2, 8

    root = jax.random.PRNGKey(0)
    pkey, xkey = jax.random.split(root)
    params = init_params(pkey, VOCAB, EMBED, HIDDEN, CLASSES)
    tokens = jax.random.randint(xkey, (B, T), 0, VOCAB, dtype=jnp.int32)

    act_dtype = select_activation_dtype()
    out = lstm_classifier_forward(tokens, params, act_dtype=act_dtype)
    out = jax.block_until_ready(out)

    ref = reference_forward(tokens, params)
    assert out.shape == (B, CLASSES)
    # Matmul operands are bf16 with f32 accumulation everywhere (2e-2, as
    # before); on v6e/v7x the gate nonlinearities additionally run in bf16 on
    # the EUP (per-chip guidance), which compounds slightly along the 8-step
    # recurrence -> loosen to 5e-2 on that path only.
    tol = 2e-2 if act_dtype == jnp.float32 else 5e-2
    np.testing.assert_allclose(np.asarray(out), np.asarray(ref), atol=tol, rtol=tol)

    print("KERNEL_OK")
</pallas_src>

<mosaic_0001>
module attributes {stable_mosaic.version = 11 : i64} {
  func.func @lstm_dir_kernel(%arg0: i32, %arg1: memref<64x128xbf16, #tpu.memory_space<vmem>>, %arg2: memref<1x128x128xbf16, #tpu.memory_space<vmem>>, %arg3: memref<1x1x128xf32, #tpu.memory_space<vmem>>, %arg4: memref<1x128x128xbf16, #tpu.memory_space<vmem>>, %arg5: memref<1x128x128xbf16, #tpu.memory_space<vmem>>, %arg6: memref<1x1x128xf32, #tpu.memory_space<vmem>>, %arg7: memref<1x8x128xf32, #tpu.memory_space<vmem>>, %arg8: memref<64x128xf32, #tpu.memory_space<vmem>>) attributes {dimension_semantics = [#tpu.dimension_semantics<parallel>], iteration_bounds = array<i64: 2>, scalar_prefetch = 0 : i64, scratch_operands = 1 : i64, tpu.core_type = #tpu.core_type<tc>, window_params = [{pipeline_mode = #tpu.pipeline_mode<synchronous>, transform_indices = @transform_0, window_bounds = array<i64: 64, 128>}, {transform_indices = @transform_1, window_bounds = array<i64: 1, 128, 128>}, {transform_indices = @transform_2, window_bounds = array<i64: 1, 1, 128>}, {transform_indices = @transform_3, window_bounds = array<i64: 1, 128, 128>}, {transform_indices = @transform_4, window_bounds = array<i64: 1, 128, 128>}, {transform_indices = @transform_5, window_bounds = array<i64: 1, 1, 128>}, {transform_indices = @transform_6, window_bounds = array<i64: 1, 8, 128>}]} {
    %c0 = arith.constant 0 : index
    %c0_0 = arith.constant 0 : index
    %0 = vector.load %arg1[%c0, %c0_0] : memref<64x128xbf16, #tpu.memory_space<vmem>>, vector<64x128xbf16>
    %c0_1 = arith.constant 0 : index
    %c0_2 = arith.constant 0 : index
    %c0_3 = arith.constant 0 : index
    %1 = vector.load %arg2[%c0_1, %c0_2, %c0_3] : memref<1x128x128xbf16, #tpu.memory_space<vmem>>, vector<1x128x128xbf16>
    %2 = vector.shape_cast %1 : vector<1x128x128xbf16> to vector<128x128xbf16>
    %cst = arith.constant dense<0.000000e+00> : vector<64x128xf32>
    %3 = tpu.matmul %0, %2, %cst {dimension_numbers = #tpu.dot_dimension_numbers<[1], [0], [0], [1], [0, 0, 1, 1], [], []>} : vector<64x128xbf16>, vector<128x128xbf16>, vector<64x128xf32> -> vector<64x128xf32>
    %c0_4 = arith.constant 0 : index
    %c0_5 = arith.constant 0 : index
    %c0_6 = arith.constant 0 : index
    %4 = vector.load %arg3[%c0_4, %c0_5, %c0_6] : memref<1x1x128xf32, #tpu.memory_space<vmem>>, vector<1x1x128xf32>
    %5 = vector.shape_cast %4 : vector<1x1x128xf32> to vector<1x128xf32>
    %6 = vector.broadcast %5 : vector<1x128xf32> to vector<64x128xf32>
    %7 = arith.addf %3, %6 : vector<64x128xf32>
    %c0_7 = arith.constant 0 : index
    %c0_8 = arith.constant 0 : index
    %8 = vector.load %arg8[%c0_7, %c0_8] : memref<64x128xf32, #tpu.memory_space<vmem>>, vector<64x128xf32>
    tpu.vector_store %arg8[%c0_7, %c0_8], %7 {strides = array<i32>} : memref<64x128xf32, #tpu.memory_space<vmem>>, vector<64x128xf32>,
    %c0_9 = arith.constant 0 : index
    %c0_10 = arith.constant 0 : index
    %c0_11 = arith.constant 0 : index
    %9 = vector.load %arg4[%c0_9, %c0_10, %c0_11] : memref<1x128x128xbf16, #tpu.memory_space<vmem>>, vector<1x128x128xbf16>
    %10 = vector.shape_cast %9 : vector<1x128x128xbf16> to vector<128x128xbf16>
    %11 = tpu.iota {dimensions = array<i32: 1>} : vector<8x128xi32>
    %c64_i32 = arith.constant 64 : i32
    %12 = vector.broadcast %c64_i32 : i32 to vector<8x128xi32>
    %13 = arith.cmpi sge, %11, %12 : vector<8x128xi32>
    %c96_i32 = arith.constant 96 : i32
    %14 = vector.broadcast %c96_i32 : i32 to vector<8x128xi32>
    %15 = arith.cmpi slt, %11, %14 : vector<8x128xi32>
    %16 = arith.andi %13, %15 : vector<8x128xi1>
    %cst_12 = arith.constant 0.000000e+00 : f32
    %17 = vector.broadcast %cst_12 : f32 to vector<8x128xf32>
    %cst_13 = arith.constant 0.000000e+00 : f32
    %18 = vector.broadcast %cst_13 : f32 to vector<8x128xf32>
    %c0_i32 = arith.constant 0 : i32
    %19 = arith.cmpi eq, %arg0, %c0_i32 : i32
    %c0_i32_14 = arith.constant 0 : i32
    %c56_i32 = arith.constant 56 : i32
    %20 = arith.select %19, %c0_i32_14, %c56_i32 : i32
    %21 = tpu.assume_multiple %20, 8 : i32
    %22 = arith.index_cast %21 : i32 to index
    %c0_15 = arith.constant 0 : index
    %23 = vector.load %arg8[%22, %c0_15] : memref<64x128xf32, #tpu.memory_space<vmem>>, vector<8x128xf32>
    %24 = arith.truncf %18 : vector<8x128xf32> to vector<8x128xbf16>
    %cst_16 = arith.constant dense<0.000000e+00> : vector<8x128xf32>
    %25 = tpu.matmul %24, %10, %cst_16 {dimension_numbers = #tpu.dot_dimension_numbers<[1], [0], [0], [1], [0, 0, 1, 1], [], []>} : vector<8x128xbf16>, vector<128x128xbf16>, vector<8x128xf32> -> vector<8x128xf32>
    %26 = arith.addf %23, %25 : vector<8x128xf32>
    %cst_17 = arith.constant 5.000000e-01 : f32
    %27 = vector.broadcast %cst_17 : f32 to vector<8x128xf32>
    %28 = arith.mulf %27, %26 : vector<8x128xf32>
    %29 = arith.select %16, %26, %28 : vector<8x128xi1>, vector<8x128xf32>
    %30 = math.tanh %29 : vector<8x128xf32>
    %cst_18 = arith.constant 1.000000e+00 : f32
    %31 = vector.broadcast %cst_18 : f32 to vector<8x128xf32>
    %32 = arith.addf %30, %31 : vector<8x128xf32>
    %cst_19 = arith.constant 5.000000e-01 : f32
    %33 = vector.broadcast %cst_19 : f32 to vector<8x128xf32>
    %34 = arith.mulf %33, %32 : vector<8x128xf32>
    %35 = arith.select %16, %30, %34 : vector<8x128xi1>, vector<8x128xf32>
    %c64_i32_20 = arith.constant 64 : i32
    %36 = tpu.dynamic_rotate %35 by %c64_i32_20 dim 1 : vector<8x128xf32>, i32 -> vector<8x128xf32>
    %37 = arith.mulf %35, %36 : vector<8x128xf32>
    %38 = arith.mulf %35, %17 : vector<8x128xf32>
    %c32_i32 = arith.constant 32 : i32
    %39 = tpu.dynamic_rotate %37 by %c32_i32 dim 1 : vector<8x128xf32>, i32 -> vector<8x128xf32>
    %40 = arith.addf %38, %39 : vector<8x128xf32>
    %41 = math.tanh %40 : vector<8x128xf32>
    %c64_i32_21 = arith.constant 64 : i32
    %42 = tpu.dynamic_rotate %41 by %c64_i32_21 dim 1 : vector<8x128xf32>, i32 -> vector<8x128xf32>
    %43 = arith.mulf %35, %42 : vector<8x128xf32>
    %c0_i32_22 = arith.constant 0 : i32
    %44 = arith.cmpi eq, %arg0, %c0_i32_22 : i32
    %c8_i32 = arith.constant 8 : i32
    %c48_i32 = arith.constant 48 : i32
    %45 = arith.select %44, %c8_i32, %c48_i32 : i32
    %46 = tpu.assume_multiple %45, 8 : i32
    %47 = arith.index_cast %46 : i32 to index
    %c0_23 = arith.constant 0 : index
    %48 = vector.load %arg8[%47, %c0_23] : memref<64x128xf32, #tpu.memory_space<vmem>>, vector<8x128xf32>
    %49 = arith.truncf %43 : vector<8x128xf32> to vector<8x128xbf16>
    %cst_24 = arith.constant dense<0.000000e+00> : vector<8x128xf32>
    %50 = tpu.matmul %49, %10, %cst_24 {dimension_numbers = #tpu.dot_dimension_numbers<[1], [0], [0], [1], [0, 0, 1, 1], [], []>} : vector<8x128xbf16>, vector<128x128xbf16>, vector<8x128xf32> -> vector<8x128xf32>
    %51 = arith.addf %48, %50 : vector<8x128xf32>
    %cst_25 = arith.constant 5.000000e-01 : f32
    %52 = vector.broadcast %cst_25 : f32 to vector<8x128xf32>
    %53 = arith.mulf %52, %51 : vector<8x128xf32>
    %54 = arith.select %16, %51, %53 : vector<8x128xi1>, vector<8x128xf32>
    %55 = math.tanh %54 : vector<8x128xf32>
    %cst_26 = arith.constant 1.000000e+00 : f32
    %56 = vector.broadcast %cst_26 : f32 to vector<8x128xf32>
    %57 = arith.addf %55, %56 : vector<8x128xf32>
    %cst_27 = arith.constant 5.000000e-01 : f32
    %58 = vector.broadcast %cst_27 : f32 to vector<8x128xf32>
    %59 = arith.mulf %58, %57 : vector<8x128xf32>
    %60 = arith.select %16, %55, %59 : vector<8x128xi1>, vector<8x128xf32>
    %c64_i32_28 = arith.constant 64 : i32
    %61 = tpu.dynamic_rotate %60 by %c64_i32_28 dim 1 : vector<8x128xf32>, i32 -> vector<8x128xf32>
    %62 = arith.mulf %60, %61 : vector<8x128xf32>
    %63 = arith.mulf %60, %40 : vector<8x128xf32>
    %c32_i32_29 = arith.constant 32 : i32
    %64 = tpu.dynamic_rotate %62 by %c32_i32_29 dim 1 : vector<8x128xf32>, i32 -> vector<8x128xf32>
    %65 = arith.addf %63, %64 : vector<8x128xf32>
    %66 = math.tanh %65 : vector<8x128xf32>
    %c64_i32_30 = arith.constant 64 : i32
    %67 = tpu.dynamic_rotate %66 by %c64_i32_30 dim 1 : vector<8x128xf32>, i32 -> vector<8x128xf32>
    %68 = arith.mulf %60, %67 : vector<8x128xf32>
    %c0_i32_31 = arith.constant 0 : i32
    %69 = arith.cmpi eq, %arg0, %c0_i32_31 : i32
    %c16_i32 = arith.constant 16 : i32
    %c40_i32 = arith.constant 40 : i32
    %70 = arith.select %69, %c16_i32, %c40_i32 : i32
    %71 = tpu.assume_multiple %70, 8 : i32
    %72 = arith.index_cast %71 : i32 to index
    %c0_32 = arith.constant 0 : index
    %73 = vector.load %arg8[%72, %c0_32] : memref<64x128xf32, #tpu.memory_space<vmem>>, vector<8x128xf32>
    %74 = arith.truncf %68 : vector<8x128xf32> to vector<8x128xbf16>
    %cst_33 = arith.constant dense<0.000000e+00> : vector<8x128xf32>
    %75 = tpu.matmul %74, %10, %cst_33 {dimension_numbers = #tpu.dot_dimension_numbers<[1], [0], [0], [1], [0, 0, 1, 1], [], []>} : vector<8x128xbf16>, vector<128x128xbf16>, vector<8x128xf32> -> vector<8x128xf32>
    %76 = arith.addf %73, %75 : vector<8x128xf32>
    %cst_34 = arith.constant 5.000000e-01 : f32
    %77 = vector.broadcast %cst_34 : f32 to vector<8x128xf32>
    %78 = arith.mulf %77, %76 : vector<8x128xf32>
    %79 = arith.select %16, %76, %78 : vector<8x128xi1>, vector<8x128xf32>
    %80 = math.tanh %79 : vector<8x128xf32>
    %cst_35 = arith.constant 1.000000e+00 : f32
    %81 = vector.broadcast %cst_35 : f32 to vector<8x128xf32>
    %82 = arith.addf %80, %81 : vector<8x128xf32>
    %cst_36 = arith.constant 5.000000e-01 : f32
    %83 = vector.broadcast %cst_36 : f32 to vector<8x128xf32>
    %84 = arith.mulf %83, %82 : vector<8x128xf32>
    %85 = arith.select %16, %80, %84 : vector<8x128xi1>, vector<8x128xf32>
    %c64_i32_37 = arith.constant 64 : i32
    %86 = tpu.dynamic_rotate %85 by %c64_i32_37 dim 1 : vector<8x128xf32>, i32 -> vector<8x128xf32>
    %87 = arith.mulf %85, %86 : vector<8x128xf32>
    %88 = arith.mulf %85, %65 : vector<8x128xf32>
    %c32_i32_38 = arith.constant 32 : i32
    %89 = tpu.dynamic_rotate %87 by %c32_i32_38 dim 1 : vector<8x128xf32>, i32 -> vector<8x128xf32>
    %90 = arith.addf %88, %89 : vector<8x128xf32>
    %91 = math.tanh %90 : vector<8x128xf32>
    %c64_i32_39 = arith.constant 64 : i32
    %92 = tpu.dynamic_rotate %91 by %c64_i32_39 dim 1 : vector<8x128xf32>, i32 -> vector<8x128xf32>
    %93 = arith.mulf %85, %92 : vector<8x128xf32>
    %c0_i32_40 = arith.constant 0 : i32
    %94 = arith.cmpi eq, %arg0, %c0_i32_40 : i32
    %c24_i32 = arith.constant 24 : i32
    %c32_i32_41 = arith.constant 32 : i32
    %95 = arith.select %94, %c24_i32, %c32_i32_41 : i32
    %96 = tpu.assume_multiple %95, 8 : i32
    %97 = arith.index_cast %96 : i32 to index
    %c0_42 = arith.constant 0 : index
    %98 = vector.load %arg8[%97, %c0_42] : memref<64x128xf32, #tpu.memory_space<vmem>>, vector<8x128xf32>
    %99 = arith.truncf %93 : vector<8x128xf32> to vector<8x128xbf16>
    %cst_43 = arith.constant dense<0.000000e+00> : vector<8x128xf32>
    %100 = tpu.matmul %99, %10, %cst_43 {dimension_numbers = #tpu.dot_dimension_numbers<[1], [0], [0], [1], [0, 0, 1, 1], [], []>} : vector<8x128xbf16>, vector<128x128xbf16>, vector<8x128xf32> -> vector<8x128xf32>
    %101 = arith.addf %98, %100 : vector<8x128xf32>
    %cst_44 = arith.constant 5.000000e-01 : f32
    %102 = vector.broadcast %cst_44 : f32 to vector<8x128xf32>
    %103 = arith.mulf %102, %101 : vector<8x128xf32>
    %104 = arith.select %16, %101, %103 : vector<8x128xi1>, vector<8x128xf32>
    %105 = math.tanh %104 : vector<8x128xf32>
    %cst_45 = arith.constant 1.000000e+00 : f32
    %106 = vector.broadcast %cst_45 : f32 to vector<8x128xf32>
    %107 = arith.addf %105, %106 : vector<8x128xf32>
    %cst_46 = arith.constant 5.000000e-01 : f32
    %108 = vector.broadcast %cst_46 : f32 to vector<8x128xf32>
    %109 = arith.mulf %108, %107 : vector<8x128xf32>
    %110 = arith.select %16, %105, %109 : vector<8x128xi1>, vector<8x128xf32>
    %c64_i32_47 = arith.constant 64 : i32
    %111 = tpu.dynamic_rotate %110 by %c64_i32_47 dim 1 : vector<8x128xf32>, i32 -> vector<8x128xf32>
    %112 = arith.mulf %110, %111 : vector<8x128xf32>
    %113 = arith.mulf %110, %90 : vector<8x128xf32>
    %c32_i32_48 = arith.constant 32 : i32
    %114 = tpu.dynamic_rotate %112 by %c32_i32_48 dim 1 : vector<8x128xf32>, i32 -> vector<8x128xf32>
    %115 = arith.addf %113, %114 : vector<8x128xf32>
    %116 = math.tanh %115 : vector<8x128xf32>
    %c64_i32_49 = arith.constant 64 : i32
    %117 = tpu.dynamic_rotate %116 by %c64_i32_49 dim 1 : vector<8x128xf32>, i32 -> vector<8x128xf32>
    %118 = arith.mulf %110, %117 : vector<8x128xf32>
    %c0_i32_50 = arith.constant 0 : i32
    %119 = arith.cmpi eq, %arg0, %c0_i32_50 : i32
    %c32_i32_51 = arith.constant 32 : i32
    %c24_i32_52 = arith.constant 24 : i32
    %120 = arith.select %119, %c32_i32_51, %c24_i32_52 : i32
    %121 = tpu.assume_multiple %120, 8 : i32
    %122 = arith.index_cast %121 : i32 to index
    %c0_53 = arith.constant 0 : index
    %123 = vector.load %arg8[%122, %c0_53] : memref<64x128xf32, #tpu.memory_space<vmem>>, vector<8x128xf32>
    %124 = arith.truncf %118 : vector<8x128xf32> to vector<8x128xbf16>
    %cst_54 = arith.constant dense<0.000000e+00> : vector<8x128xf32>
    %125 = tpu.matmul %124, %10, %cst_54 {dimension_numbers = #tpu.dot_dimension_numbers<[1], [0], [0], [1], [0, 0, 1, 1], [], []>} : vector<8x128xbf16>, vector<128x128xbf16>, vector<8x128xf32> -> vector<8x128xf32>
    %126 = arith.addf %123, %125 : vector<8x128xf32>
    %cst_55 = arith.constant 5.000000e-01 : f32
    %127 = vector.broadcast %cst_55 : f32 to vector<8x128xf32>
    %128 = arith.mulf %127, %126 : vector<8x128xf32>
    %129 = arith.select %16, %126, %128 : vector<8x128xi1>, vector<8x128xf32>
    %130 = math.tanh %129 : vector<8x128xf32>
    %cst_56 = arith.constant 1.000000e+00 : f32
    %131 = vector.broadcast %cst_56 : f32 to vector<8x128xf32>
    %132 = arith.addf %130, %131 : vector<8x128xf32>
    %cst_57 = arith.constant 5.000000e-01 : f32
    %133 = vector.broadcast %cst_57 : f32 to vector<8x128xf32>
    %134 = arith.mulf %133, %132 : vector<8x128xf32>
    %135 = arith.select %16, %130, %134 : vector<8x128xi1>, vector<8x128xf32>
    %c64_i32_58 = arith.constant 64 : i32
    %136 = tpu.dynamic_rotate %135 by %c64_i32_58 dim 1 : vector<8x128xf32>, i32 -> vector<8x128xf32>
    %137 = arith.mulf %135, %136 : vector<8x128xf32>
    %138 = arith.mulf %135, %115 : vector<8x128xf32>
    %c32_i32_59 = arith.constant 32 : i32
    %139 = tpu.dynamic_rotate %137 by %c32_i32_59 dim 1 : vector<8x128xf32>, i32 -> vector<8x128xf32>
    %140 = arith.addf %138, %139 : vector<8x128xf32>
    %141 = math.tanh %140 : vector<8x128xf32>
    %c64_i32_60 = arith.constant 64 : i32
    %142 = tpu.dynamic_rotate %141 by %c64_i32_60 dim 1 : vector<8x128xf32>, i32 -> vector<8x128xf32>
    %143 = arith.mulf %135, %142 : vector<8x128xf32>
    %c0_i32_61 = arith.constant 0 : i32
    %144 = arith.cmpi eq, %arg0, %c0_i32_61 : i32
    %c40_i32_62 = arith.constant 40 : i32
    %c16_i32_63 = arith.constant 16 : i32
    %145 = arith.select %144, %c40_i32_62, %c16_i32_63 : i32
    %146 = tpu.assume_multiple %145, 8 : i32
    %147 = arith.index_cast %146 : i32 to index
    %c0_64 = arith.constant 0 : index
    %148 = vector.load %arg8[%147, %c0_64] : memref<64x128xf32, #tpu.memory_space<vmem>>, vector<8x128xf32>
    %149 = arith.truncf %143 : vector<8x128xf32> to vector<8x128xbf16>
    %cst_65 = arith.constant dense<0.000000e+00> : vector<8x128xf32>
    %150 = tpu.matmul %149, %10, %cst_65 {dimension_numbers = #tpu.dot_dimension_numbers<[1], [0], [0], [1], [0, 0, 1, 1], [], []>} : vector<8x128xbf16>, vector<128x128xbf16>, vector<8x128xf32> -> vector<8x128xf32>
    %151 = arith.addf %148, %150 : vector<8x128xf32>
    %cst_66 = arith.constant 5.000000e-01 : f32
    %152 = vector.broadcast %cst_66 : f32 to vector<8x128xf32>
    %153 = arith.mulf %152, %151 : vector<8x128xf32>
    %154 = arith.select %16, %151, %153 : vector<8x128xi1>, vector<8x128xf32>
    %155 = math.tanh %154 : vector<8x128xf32>
    %cst_67 = arith.constant 1.000000e+00 : f32
    %156 = vector.broadcast %cst_67 : f32 to vector<8x128xf32>
    %157 = arith.addf %155, %156 : vector<8x128xf32>
    %cst_68 = arith.constant 5.000000e-01 : f32
    %158 = vector.broadcast %cst_68 : f32 to vector<8x128xf32>
    %159 = arith.mulf %158, %157 : vector<8x128xf32>
    %160 = arith.select %16, %155, %159 : vector<8x128xi1>, vector<8x128xf32>
    %c64_i32_69 = arith.constant 64 : i32
    %161 = tpu.dynamic_rotate %160 by %c64_i32_69 dim 1 : vector<8x128xf32>, i32 -> vector<8x128xf32>
    %162 = arith.mulf %160, %161 : vector<8x128xf32>
    %163 = arith.mulf %160, %140 : vector<8x128xf32>
    %c32_i32_70 = arith.constant 32 : i32
    %164 = tpu.dynamic_rotate %162 by %c32_i32_70 dim 1 : vector<8x128xf32>, i32 -> vector<8x128xf32>
    %165 = arith.addf %163, %164 : vector<8x128xf32>
    %166 = math.tanh %165 : vector<8x128xf32>
    %c64_i32_71 = arith.constant 64 : i32
    %167 = tpu.dynamic_rotate %166 by %c64_i32_71 dim 1 : vector<8x128xf32>, i32 -> vector<8x128xf32>
    %168 = arith.mulf %160, %167 : vector<8x128xf32>
    %c0_i32_72 = arith.constant 0 : i32
    %169 = arith.cmpi eq, %arg0, %c0_i32_72 : i32
    %c48_i32_73 = arith.constant 48 : i32
    %c8_i32_74 = arith.constant 8 : i32
    %170 = arith.select %169, %c48_i32_73, %c8_i32_74 : i32
    %171 = tpu.assume_multiple %170, 8 : i32
    %172 = arith.index_cast %171 : i32 to index
    %c0_75 = arith.constant 0 : index
    %173 = vector.load %arg8[%172, %c0_75] : memref<64x128xf32, #tpu.memory_space<vmem>>, vector<8x128xf32>
    %174 = arith.truncf %168 : vector<8x128xf32> to vector<8x128xbf16>
    %cst_76 = arith.constant dense<0.000000e+00> : vector<8x128xf32>
    %175 = tpu.matmul %174, %10, %cst_76 {dimension_numbers = #tpu.dot_dimension_numbers<[1], [0], [0], [1], [0, 0, 1, 1], [], []>} : vector<8x128xbf16>, vector<128x128xbf16>, vector<8x128xf32> -> vector<8x128xf32>
    %176 = arith.addf %173, %175 : vector<8x128xf32>
    %cst_77 = arith.constant 5.000000e-01 : f32
    %177 = vector.broadcast %cst_77 : f32 to vector<8x128xf32>
    %178 = arith.mulf %177, %176 : vector<8x128xf32>
    %179 = arith.select %16, %176, %178 : vector<8x128xi1>, vector<8x128xf32>
    %180 = math.tanh %179 : vector<8x128xf32>
    %cst_78 = arith.constant 1.000000e+00 : f32
    %181 = vector.broadcast %cst_78 : f32 to vector<8x128xf32>
    %182 = arith.addf %180, %181 : vector<8x128xf32>
    %cst_79 = arith.constant 5.000000e-01 : f32
    %183 = vector.broadcast %cst_79 : f32 to vector<8x128xf32>
    %184 = arith.mulf %183, %182 : vector<8x128xf32>
    %185 = arith.select %16, %180, %184 : vector<8x128xi1>, vector<8x128xf32>
    %c64_i32_80 = arith.constant 64 : i32
    %186 = tpu.dynamic_rotate %185 by %c64_i32_80 dim 1 : vector<8x128xf32>, i32 -> vector<8x128xf32>
    %187 = arith.mulf %185, %186 : vector<8x128xf32>
    %188 = arith.mulf %185, %165 : vector<8x128xf32>
    %c32_i32_81 = arith.constant 32 : i32
    %189 = tpu.dynamic_rotate %187 by %c32_i32_81 dim 1 : vector<8x128xf32>, i32 -> vector<8x128xf32>
    %190 = arith.addf %188, %189 : vector<8x128xf32>
    %191 = math.tanh %190 : vector<8x128xf32>
    %c64_i32_82 = arith.constant 64 : i32
    %192 = tpu.dynamic_rotate %191 by %c64_i32_82 dim 1 : vector<8x128xf32>, i32 -> vector<8x128xf32>
    %193 = arith.mulf %185, %192 : vector<8x128xf32>
    %c0_i32_83 = arith.constant 0 : i32
    %194 = arith.cmpi eq, %arg0, %c0_i32_83 : i32
    %c56_i32_84 = arith.constant 56 : i32
    %c0_i32_85 = arith.constant 0 : i32
    %195 = arith.select %194, %c56_i32_84, %c0_i32_85 : i32
    %196 = tpu.assume_multiple %195, 8 : i32
    %197 = arith.index_cast %196 : i32 to index
    %c0_86 = arith.constant 0 : index
    %198 = vector.load %arg8[%197, %c0_86] : memref<64x128xf32, #tpu.memory_space<vmem>>, vector<8x128xf32>
    %199 = arith.truncf %193 : vector<8x128xf32> to vector<8x128xbf16>
    %cst_87 = arith.constant dense<0.000000e+00> : vector<8x128xf32>
    %200 = tpu.matmul %199, %10, %cst_87 {dimension_numbers = #tpu.dot_dimension_numbers<[1], [0], [0], [1], [0, 0, 1, 1], [], []>} : vector<8x128xbf16>, vector<128x128xbf16>, vector<8x128xf32> -> vector<8x128xf32>
    %201 = arith.addf %198, %200 : vector<8x128xf32>
    %cst_88 = arith.constant 5.000000e-01 : f32
    %202 = vector.broadcast %cst_88 : f32 to vector<8x128xf32>
    %203 = arith.mulf %202, %201 : vector<8x128xf32>
    %204 = arith.select %16, %201, %203 : vector<8x128xi1>, vector<8x128xf32>
    %205 = math.tanh %204 : vector<8x128xf32>
    %cst_89 = arith.constant 1.000000e+00 : f32
    %206 = vector.broadcast %cst_89 : f32 to vector<8x128xf32>
    %207 = arith.addf %205, %206 : vector<8x128xf32>
    %cst_90 = arith.constant 5.000000e-01 : f32
    %208 = vector.broadcast %cst_90 : f32 to vector<8x128xf32>
    %209 = arith.mulf %208, %207 : vector<8x128xf32>
    %210 = arith.select %16, %205, %209 : vector<8x128xi1>, vector<8x128xf32>
    %c64_i32_91 = arith.constant 64 : i32
    %211 = tpu.dynamic_rotate %210 by %c64_i32_91 dim 1 : vector<8x128xf32>, i32 -> vector<8x128xf32>
    %212 = arith.mulf %210, %211 : vector<8x128xf32>
    %213 = arith.mulf %210, %190 : vector<8x128xf32>
    %c32_i32_92 = arith.constant 32 : i32
    %214 = tpu.dynamic_rotate %212 by %c32_i32_92 dim 1 : vector<8x128xf32>, i32 -> vector<8x128xf32>
    %215 = arith.addf %213, %214 : vector<8x128xf32>
    %216 = math.tanh %215 : vector<8x128xf32>
    %c64_i32_93 = arith.constant 64 : i32
    %217 = tpu.dynamic_rotate %216 by %c64_i32_93 dim 1 : vector<8x128xf32>, i32 -> vector<8x128xf32>
    %218 = arith.mulf %210, %217 : vector<8x128xf32>
    %219 = arith.truncf %218 : vector<8x128xf32> to vector<8x128xbf16>
    %c0_94 = arith.constant 0 : index
    %c0_95 = arith.constant 0 : index
    %c0_96 = arith.constant 0 : index
    %220 = vector.load %arg5[%c0_94, %c0_95, %c0_96] : memref<1x128x128xbf16, #tpu.memory_space<vmem>>, vector<1x128x128xbf16>
    %221 = vector.shape_cast %220 : vector<1x128x128xbf16> to vector<128x128xbf16>
    %cst_97 = arith.constant dense<0.000000e+00> : vector<8x128xf32>
    %222 = tpu.matmul %219, %221, %cst_97 {dimension_numbers = #tpu.dot_dimension_numbers<[1], [0], [0], [1], [0, 0, 1, 1], [], []>} : vector<8x128xbf16>, vector<128x128xbf16>, vector<8x128xf32> -> vector<8x128xf32>
    %c0_98 = arith.constant 0 : index
    %c0_99 = arith.constant 0 : index
    %c0_100 = arith.constant 0 : index
    %223 = vector.load %arg6[%c0_98, %c0_99, %c0_100] : memref<1x1x128xf32, #tpu.memory_space<vmem>>, vector<1x1x128xf32>
    %224 = vector.shape_cast %223 : vector<1x1x128xf32> to vector<1x128xf32>
    %225 = vector.broadcast %224 : vector<1x128xf32> to vector<8x128xf32>
    %226 = arith.addf %222, %225 : vector<8x128xf32>
    %c0_101 = arith.constant 0 : index
    %c0_102 = arith.constant 0 : index
    %c0_103 = arith.constant 0 : index
    %227 = vector.load %arg7[%c0_101, %c0_102, %c0_103] : memref<1x8x128xf32, #tpu.memory_space<vmem>>, vector<1x8x128xf32>
    %228 = vector.shape_cast %227 : vector<1x8x128xf32> to vector<8x128xf32>
    %229 = vector.shape_cast %226 : vector<8x128xf32> to vector<1x8x128xf32>
    tpu.vector_store %arg7[%c0_101, %c0_102, %c0_103], %229 {strides = array<i32>} : memref<1x8x128xf32, #tpu.memory_space<vmem>>, vector<1x8x128xf32>,
    return
  }
  func.func @transform_0(%arg0: i32) -> (i32, i32) {
    %c0_i32 = arith.constant 0 : i32
    %c0_i32_0 = arith.constant 0 : i32
    %c0_i32_1 = arith.constant 0 : i32
    return %c0_i32, %c0_i32_0 : i32, i32
  }
  func.func @transform_1(%arg0: i32) -> (i32, i32, i32) {
    %c0_i32 = arith.constant 0 : i32
    %c0_i32_0 = arith.constant 0 : i32
    %c0_i32_1 = arith.constant 0 : i32
    return %arg0, %c0_i32, %c0_i32_0 : i32, i32, i32
  }
  func.func @transform_2(%arg0: i32) -> (i32, i32, i32) {
    %c0_i32 = arith.constant 0 : i32
    %c0_i32_0 = arith.constant 0 : i32
    %c0_i32_1 = arith.constant 0 : i32
    return %arg0, %c0_i32, %c0_i32_0 : i32, i32, i32
  }
  func.func @transform_3(%arg0: i32) -> (i32, i32, i32) {
    %c0_i32 = arith.constant 0 : i32
    %c0_i32_0 = arith.constant 0 : i32
    %c0_i32_1 = arith.constant 0 : i32
    return %arg0, %c0_i32, %c0_i32_0 : i32, i32, i32
  }
  func.func @transform_4(%arg0: i32) -> (i32, i32, i32) {
    %c0_i32 = arith.constant 0 : i32
    %c0_i32_0 = arith.constant 0 : i32
    %c0_i32_1 = arith.constant 0 : i32
    return %arg0, %c0_i32, %c0_i32_0 : i32, i32, i32
  }
  func.func @transform_5(%arg0: i32) -> (i32, i32, i32) {
    %c0_i32 = arith.constant 0 : i32
    %c0_i32_0 = arith.constant 0 : i32
    %c0_i32_1 = arith.constant 0 : i32
    return %arg0, %c0_i32, %c0_i32_0 : i32, i32, i32
  }
  func.func @transform_6(%arg0: i32) -> (i32, i32, i32) {
    %c0_i32 = arith.constant 0 : i32
    %c0_i32_0 = arith.constant 0 : i32
    %c0_i32_1 = arith.constant 0 : i32
    return %arg0, %c0_i32, %c0_i32_0 : i32, i32, i32
  }
}

</mosaic_0001>

<llo_original>
// kernel: tpu_custom_call.1
$region0: #{tpu_custom_call.1}
  #allocation0 [shape = 'u32[]', space=smem, size = 0x4, offset = 0x4, fixed_abs, tag = 'smem constant byte address 0x4 - core index']
  #allocation1 [shape = 'u32[72,128]{1,0:T(1,128)}', space=vmem, size = 0x9000, scoped, tag = 'internal scratch']
  #allocation2 [shape = 'f32[64,128]{1,0:T(8,128)}', space=vmem, size = 0x8000, scoped, tag = 'scratch operand']
  %s0 = inlined_call_operand.hbm [shape: bf16[64,128], index: 0, kind: input, shape index: {}]
  %s1 = inlined_call_operand.hbm [shape: bf16[2,128,128], index: 1, kind: input, shape index: {}]
  %s2 = inlined_call_operand.hbm [shape: f32[2,1,128], index: 2, kind: input, shape index: {}]
  %s3 = inlined_call_operand.hbm [shape: bf16[2,128,128], index: 3, kind: input, shape index: {}]
  %s4 = inlined_call_operand.hbm [shape: bf16[2,128,128], index: 4, kind: input, shape index: {}]
  %s5 = inlined_call_operand.vmem [shape: f32[2,1,128], index: 5, kind: input, shape index: {}]
  %s6 = inlined_call_operand.hbm [shape: f32[2,8,128], index: 6, kind: output, shape index: {}]
  %s7 = sld [smem:[#allocation0]]
  $region77: #{tpu_custom_call.1} parent=0
    _
  %s9 = ssub.s32 1, %s7
  %s10 = scalar_select 0, %s9, %s7
  $region1: #{tpu_custom_call.1} parent=0
    #allocation3 [shape = 'u8[16384]{0}', space=vmem, size = 0x4000, scoped, tag = 'input window, operand 0, single buffered']
    #allocation4 [shape = 's32[2]{0}', space=sflag, size = 0x8, scoped, tag = 'scoped memory for tpu_custom_call.1']
    #allocation5 [shape = 's32[2]{0}', space=sflag, size = 0x8, scoped, tag = 'scoped memory for tpu_custom_call.1']
    #allocation6 [shape = 'u8[65536]{0}', space=vmem, size = 0x10000, scoped, tag = 'input window, operand 1']
    #allocation7 [shape = 's32[2]{0}', space=sflag, size = 0x8, scoped, tag = 'scoped memory for tpu_custom_call.1']
    #allocation8 [shape = 'u8[1024]{0}', space=vmem, size = 0x400, scoped, tag = 'input window, operand 2']
    #allocation9 [shape = 'u8[65536]{0}', space=vmem, size = 0x10000, scoped, tag = 'input window, operand 3']
    #allocation10 [shape = 's32[2]{0}', space=sflag, size = 0x8, scoped, tag = 'scoped memory for tpu_custom_call.1']
    #allocation11 [shape = 'u8[65536]{0}', space=vmem, size = 0x10000, scoped, tag = 'input window, operand 4']
    #allocation12 [shape = 'u8[8192]{0}', space=vmem, size = 0x2000, scoped, tag = 'output window, operand 0']
    %11 = vsyncpa [#allocation4], 0
    %12 = vsyncpa [#allocation7], 0
    %s13 = scalar_lea.sflag [#allocation7], 1
    %14 = vsyncpa %s13, 0
    %15 = vsyncpa [#allocation10], 0
    %s16 = scalar_lea.sflag [#allocation10], 1
    %17 = vsyncpa %s16, 0
    %18 = vsyncpa [#allocation5], 0
    %s19 = scalar_lea.sflag [#allocation5], 1
    %20 = vsyncpa %s19, 0
    loop: start=0, step=1, limit=4
    $region2: #{tpu_custom_call.1} parent=1 // loop_pre_header
      _
    $region3: #{tpu_custom_call.1} parent=1 // loop_header
      %s22 = sphi 0, %s26
      %p23 = scmp.ge.s32.totalorder %s22, 4
      %s30 = sphi 0, %s30
      %s32 = sphi 0, %s30
      %s33 = sphi 0, %s32
      %s47 = sphi 0, %s33
      %s53 = sphi 0, %s55
      %s56 = sphi 0, %s53
      %s57 = sphi 0, %s56
      %s73 = sphi 0, %s57
      %s79 = sphi 0, %s81
      %s82 = sphi 0, %s79
      %s83 = sphi 0, %s82
      %s99 = sphi 0, %s83
      %s105 = sphi 0, %s107
      %s108 = sphi 0, %s105
      %s109 = sphi 0, %s108
      %s125 = sphi 0, %s109
      %s131 = sphi 0, %s133
      %s134 = sphi 0, %s131
      %s135 = sphi 0, %s134
      %s151 = sphi 0, %s135
      %s157 = sphi 0, %s159
      %s160 = sphi 0, %s157
      %s161 = sphi 0, %s160
      %s177 = sphi 0, %s161
      %s183 = sphi 0, %s185
      %s186 = sphi 0, %s183
      %s187 = sphi 0, %s186
      %s203 = sphi 0, %s187
    $region4: #{tpu_custom_call.1} parent=1 // loop_header_branch
      %25 = sbr.rel (%p23) target = $region8
    $region5: #{tpu_custom_call.1} parent=1 // loop_body
      %s27 = ssub.s32 %s22, 1
      %s28 = ssub.s32 %s22, 2
      %s29 = sadd.s32 %s22, 1
      %s31 = sadd.s32 %s30, 1
      %p34 = scmp.eq.s32.totalorder %s22, 1
      %p35 = scmp.ne.s32.totalorder %s30, %s32
      %p36 = scmp.eq.s32.totalorder %s22, 0
      %p37 = por %p35, %p36
      %p38 = scmp.ne.s32.totalorder %s30, %s32
      %p39 = scmp.eq.s32.totalorder %s27, 1
      %p40 = por %p38, %p39
      %p41 = scmp.ne.s32.totalorder %s32, %s33
      %p42 = scmp.eq.s32.totalorder %s27, 0
      %p43 = por %p41, %p42
      %p44 = scmp.ne.s32.totalorder %s32, %s33
      %p45 = scmp.eq.s32.totalorder %s28, 1
      %p46 = por %p44, %p45
      %p48 = scmp.ne.s32.totalorder %s33, %s47
      %p49 = scmp.eq.s32.totalorder %s28, 0
      %p50 = por %p48, %p49
      %s51 = ssub.s32 %s22, %s29
      %p52 = scmp.eq.s32.totalorder %s51, 0
      %s54 = sadd.s32 %s53, 1
      %s55 = scalar_select %p52, %s53, %s54
      %p58 = pneg %p52
      %p59 = scmp.eq.s32.totalorder %s22, 1
      %p60 = por %p58, %p59
      %p61 = scmp.ne.s32.totalorder %s53, %s56
      %p62 = scmp.eq.s32.totalorder %s22, 0
      %p63 = por %p61, %p62
      %p64 = scmp.ne.s32.totalorder %s53, %s56
      %p65 = scmp.eq.s32.totalorder %s27, 1
      %p66 = por %p64, %p65
      %p67 = scmp.ne.s32.totalorder %s56, %s57
      %p68 = scmp.eq.s32.totalorder %s27, 0
      %p69 = por %p67, %p68
      %p70 = scmp.ne.s32.totalorder %s56, %s57
      %p71 = scmp.eq.s32.totalorder %s28, 1
      %p72 = por %p70, %p71
      %p74 = scmp.ne.s32.totalorder %s57, %s73
      %p75 = scmp.eq.s32.totalorder %s28, 0
      %p76 = por %p74, %p75
      %s77 = ssub.s32 %s22, %s29
      %p78 = scmp.eq.s32.totalorder %s77, 0
      %s80 = sadd.s32 %s79, 1
      %s81 = scalar_select %p78, %s79, %s80
      %p84 = pneg %p78
      %p85 = scmp.eq.s32.totalorder %s22, 1
      %p86 = por %p84, %p85
      %p87 = scmp.ne.s32.totalorder %s79, %s82
      %p88 = scmp.eq.s32.totalorder %s22, 0
      %p89 = por %p87, %p88
      %p90 = scmp.ne.s32.totalorder %s79, %s82
      %p91 = scmp.eq.s32.totalorder %s27, 1
      %p92 = por %p90, %p91
      %p93 = scmp.ne.s32.totalorder %s82, %s83
      %p94 = scmp.eq.s32.totalorder %s27, 0
      %p95 = por %p93, %p94
      %p96 = scmp.ne.s32.totalorder %s82, %s83
      %p97 = scmp.eq.s32.totalorder %s28, 1
      %p98 = por %p96, %p97
      %p100 = scmp.ne.s32.totalorder %s83, %s99
      %p101 = scmp.eq.s32.totalorder %s28, 0
      %p102 = por %p100, %p101
      %s103 = ssub.s32 %s22, %s29
      %p104 = scmp.eq.s32.totalorder %s103, 0
      %s106 = sadd.s32 %s105, 1
      %s107 = scalar_select %p104, %s105, %s106
      %p110 = pneg %p104
      %p111 = scmp.eq.s32.totalorder %s22, 1
      %p112 = por %p110, %p111
      %p113 = scmp.ne.s32.totalorder %s105, %s108
      %p114 = scmp.eq.s32.totalorder %s22, 0
      %p115 = por %p113, %p114
      %p116 = scmp.ne.s32.totalorder %s105, %s108
      %p117 = scmp.eq.s32.totalorder %s27, 1
      %p118 = por %p116, %p117
      %p119 = scmp.ne.s32.totalorder %s108, %s109
      %p120 = scmp.eq.s32.totalorder %s27, 0
      %p121 = por %p119, %p120
      %p122 = scmp.ne.s32.totalorder %s108, %s109
      %p123 = scmp.eq.s32.totalorder %s28, 1
      %p124 = por %p122, %p123
      %p126 = scmp.ne.s32.totalorder %s109, %s125
      %p127 = scmp.eq.s32.totalorder %s28, 0
      %p128 = por %p126, %p127
      %s129 = ssub.s32 %s22, %s29
      %p130 = scmp.eq.s32.totalorder %s129, 0
      %s132 = sadd.s32 %s131, 1
      %s133 = scalar_select %p130, %s131, %s132
      %p136 = pneg %p130
      %p137 = scmp.eq.s32.totalorder %s22, 1
      %p138 = por %p136, %p137
      %p139 = scmp.ne.s32.totalorder %s131, %s134
      %p140 = scmp.eq.s32.totalorder %s22, 0
      %p141 = por %p139, %p140
      %p142 = scmp.ne.s32.totalorder %s131, %s134
      %p143 = scmp.eq.s32.totalorder %s27, 1
      %p144 = por %p142, %p143
      %p145 = scmp.ne.s32.totalorder %s134, %s135
      %p146 = scmp.eq.s32.totalorder %s27, 0
      %p147 = por %p145, %p146
      %p148 = scmp.ne.s32.totalorder %s134, %s135
      %p149 = scmp.eq.s32.totalorder %s28, 1
      %p150 = por %p148, %p149
      %p152 = scmp.ne.s32.totalorder %s135, %s151
      %p153 = scmp.eq.s32.totalorder %s28, 0
      %p154 = por %p152, %p153
      %s155 = ssub.s32 %s22, %s29
      %p156 = scmp.eq.s32.totalorder %s155, 0
      %s158 = sadd.s32 %s157, 1
      %s159 = scalar_select %p156, %s157, %s158
      %p162 = pneg %p156
      %p163 = scmp.eq.s32.totalorder %s22, 1
      %p164 = por %p162, %p163
      %p165 = scmp.ne.s32.totalorder %s157, %s160
      %p166 = scmp.eq.s32.totalorder %s22, 0
      %p167 = por %p165, %p166
      %p168 = scmp.ne.s32.totalorder %s157, %s160
      %p169 = scmp.eq.s32.totalorder %s27, 1
      %p170 = por %p168, %p169
      %p171 = scmp.ne.s32.totalorder %s160, %s161
      %p172 = scmp.eq.s32.totalorder %s27, 0
      %p173 = por %p171, %p172
      %p174 = scmp.ne.s32.totalorder %s160, %s161
      %p175 = scmp.eq.s32.totalorder %s28, 1
      %p176 = por %p174, %p175
      %p178 = scmp.ne.s32.totalorder %s161, %s177
      %p179 = scmp.eq.s32.totalorder %s28, 0
      %p180 = por %p178, %p179
      %s181 = ssub.s32 %s22, %s29
      %p182 = scmp.eq.s32.totalorder %s181, 0
      %s184 = sadd.s32 %s183, 1
      %s185 = scalar_select %p182, %s183, %s184
      %p188 = pneg %p182
      %p189 = scmp.eq.s32.totalorder %s22, 1
      %p190 = por %p188, %p189
      %p191 = scmp.ne.s32.totalorder %s183, %s186
      %p192 = scmp.eq.s32.totalorder %s22, 0
      %p193 = por %p191, %p192
      %p194 = scmp.ne.s32.totalorder %s183, %s186
      %p195 = scmp.eq.s32.totalorder %s27, 1
      %p196 = por %p194, %p195
      %p197 = scmp.ne.s32.totalorder %s186, %s187
      %p198 = scmp.eq.s32.totalorder %s27, 0
      %p199 = por %p197, %p198
      %p200 = scmp.ne.s32.totalorder %s186, %s187
      %p201 = scmp.eq.s32.totalorder %s28, 1
      %p202 = por %p200, %p201
      %p204 = scmp.ne.s32.totalorder %s187, %s203
      %p205 = scmp.eq.s32.totalorder %s28, 0
      %p206 = por %p204, %p205
      %p207 = scmp.le.s32.totalorder 1, %s22
      %p208 = scmp.lt.s32.totalorder %s22, 3
      %p209 = pnand %p207, %p208
      %p210 = pneg %p209
      // Predicated region
      $region9: #{tpu_custom_call.1} parent=5 // pred_check
        _
      $region10: #{tpu_custom_call.1} parent=5 // pred_check_branch
        %212 = sbr.rel (%p209) target = $region12
      $region11: #{tpu_custom_call.1} parent=5 // pred_region
        %s213 = ssub.s32 %s22, 1
        // Predicated region
        $region13: #{tpu_custom_call.1} parent=11 // pred_check
          %p214 = pneg %p43
        $region14: #{tpu_custom_call.1} parent=11 // pred_check_branch
          %216 = sbr.rel (%p214) target = $region16
        $region15: #{tpu_custom_call.1} parent=11 // pred_region
          %218 = vsyncadd [#allocation4], 0
          %s219 = sshll.u32 %s0, 4
          %s220 = int_to_ptr.hbm [resolvable:$true] %s219
          %s221 = sshll.u32 [#allocation3], 4
          %s222 = int_to_ptr.vmem [resolvable:$true] %s221
          %227 = dma.hbm_to_vmem [thread:$0]  %s220, 512, %s222, [#allocation4], 64, 64, 4
        $region16: #{tpu_custom_call.1} parent=11 // pred_fallthru
          _
      $region12: #{tpu_custom_call.1} parent=5 // pred_fallthru
        _
      %p228 = scmp.lt.s32.totalorder %s22, 2
      // Predicated region
      $region17: #{tpu_custom_call.1} parent=5 // pred_check
        %p229 = pneg %p228
      $region18: #{tpu_custom_call.1} parent=5 // pred_check_branch
        %231 = sbr.rel (%p229) target = $region20
      $region19: #{tpu_custom_call.1} parent=5 // pred_region
        // Predicated region
        $region21: #{tpu_custom_call.1} parent=19 // pred_check
          %p232 = pneg %p63
        $region22: #{tpu_custom_call.1} parent=19 // pred_check_branch
          %234 = sbr.rel (%p232) target = $region24
        $region23: #{tpu_custom_call.1} parent=19 // pred_region
          %s235 = sand.u32 %s22, 1
          %s236 = scalar_lea.sflag [#allocation7], %s235
          %s237 = sand.u32 %s53, 1
          %s238 = smul.addr %s237, 64
          %s239 = scalar_lea.vmem [#allocation6], %s238
          %241 = vsyncadd %s236, 0
          %s242 = smul.addr %s22, 16
          %s243 = smul.addr %s242, 4
          %s244 = scalar_lea.hbm %s1, %s243
          %s245 = sshll.u32 %s244, 4
          %s246 = int_to_ptr.hbm [resolvable:$true] %s245
          %s247 = sshll.u32 %s239, 4
          %s248 = int_to_ptr.vmem [resolvable:$true] %s247
          %253 = dma.hbm_to_vmem [thread:$0]  %s246, 1024, %s248, %s236, 64, 64, 4
        $region24: #{tpu_custom_call.1} parent=19 // pred_fallthru
          _
        // Predicated region
        $region25: #{tpu_custom_call.1} parent=19 // pred_check
          %p254 = pneg %p89
        $region26: #{tpu_custom_call.1} parent=19 // pred_check_branch
          %256 = sbr.rel (%p254) target = $region28
        $region27: #{tpu_custom_call.1} parent=19 // pred_region
          %s257 = sand.u32 %s22, 1
          %s258 = scalar_lea.sflag [#allocation7], %s257
          %s259 = sand.u32 %s79, 1
          %s260 = scalar_lea.vmem [#allocation8], %s259
          %262 = vsyncadd %s258, 0
          %s263 = scalar_lea.hbm %s2, %s22
          %s265 = sshll.u32 %s263, 4
          %s266 = int_to_ptr.hbm [resolvable:$true] %s265
          %s267 = sshll.u32 %s260, 4
          %s268 = int_to_ptr.vmem [resolvable:$true] %s267
          %270 = dma.hbm_to_vmem [thread:$0]  %s266, 16, %s268, %s258
        $region28: #{tpu_custom_call.1} parent=19 // pred_fallthru
          _
        // Predicated region
        $region29: #{tpu_custom_call.1} parent=19 // pred_check
          %p271 = pneg %p115
        $region30: #{tpu_custom_call.1} parent=19 // pred_check_branch
          %273 = sbr.rel (%p271) target = $region32
        $region31: #{tpu_custom_call.1} parent=19 // pred_region
          %s274 = sand.u32 %s22, 1
          %s275 = scalar_lea.sflag [#allocation10], %s274
          %s276 = sand.u32 %s105, 1
          %s277 = smul.addr %s276, 64
          %s278 = scalar_lea.vmem [#allocation9], %s277
          %280 = vsyncadd %s275, 0
          %s281 = smul.addr %s22, 16
          %s282 = smul.addr %s281, 4
          %s283 = scalar_lea.hbm %s3, %s282
          %s284 = sshll.u32 %s283, 4
          %s285 = int_to_ptr.hbm [resolvable:$true] %s284
          %s286 = sshll.u32 %s278, 4
          %s287 = int_to_ptr.vmem [resolvable:$true] %s286
          %292 = dma.hbm_to_vmem [thread:$0]  %s285, 1024, %s287, %s275, 64, 64, 4
        $region32: #{tpu_custom_call.1} parent=19 // pred_fallthru
          _
        // Predicated region
        $region33: #{tpu_custom_call.1} parent=19 // pred_check
          %p293 = pneg %p141
        $region34: #{tpu_custom_call.1} parent=19 // pred_check_branch
          %295 = sbr.rel (%p293) target = $region36
        $region35: #{tpu_custom_call.1} parent=19 // pred_region
          %s296 = sand.u32 %s22, 1
          %s297 = scalar_lea.sflag [#allocation10], %s296
          %s298 = sand.u32 %s131, 1
          %s299 = smul.addr %s298, 64
          %s300 = scalar_lea.vmem [#allocation11], %s299
          %302 = vsyncadd %s297, 0
          %s303 = smul.addr %s22, 16
          %s304 = smul.addr %s303, 4
          %s305 = scalar_lea.hbm %s4, %s304
          %s306 = sshll.u32 %s305, 4
          %s307 = int_to_ptr.hbm [resolvable:$true] %s306
          %s308 = sshll.u32 %s300, 4
          %s309 = int_to_ptr.vmem [resolvable:$true] %s308
          %314 = dma.hbm_to_vmem [thread:$0]  %s307, 1024, %s309, %s297, 64, 64, 4
        $region36: #{tpu_custom_call.1} parent=19 // pred_fallthru
          _
        // Predicated region
        $region37: #{tpu_custom_call.1} parent=19 // pred_check
          %p315 = pneg %p167
        $region38: #{tpu_custom_call.1} parent=19 // pred_check_branch
          %317 = sbr.rel (%p315) target = $region40
        $region39: #{tpu_custom_call.1} parent=19 // pred_region
          %p318 = scmp.lt.s32.totalorder %s22, 1
          %s319 = scalar_select %p318, %s22, 1
          %s320 = scalar_lea.vmem %s5, %s319
        $region40: #{tpu_custom_call.1} parent=19 // pred_fallthru
          _
      $region20: #{tpu_custom_call.1} parent=5 // pred_fallthru
        _
      %p321 = scmp.le.s32.totalorder 1, %s22
      %p322 = scmp.lt.s32.totalorder %s22, 3
      %p323 = pnand %p321, %p322
      %p324 = pneg %p323
      // Predicated region
      $region41: #{tpu_custom_call.1} parent=5 // pred_check
        _
      $region42: #{tpu_custom_call.1} parent=5 // pred_check_branch
        %326 = sbr.rel (%p323) target = $region44
      $region43: #{tpu_custom_call.1} parent=5 // pred_region
        %s327 = ssub.s32 %s22, 1
        // Predicated region
        $region45: #{tpu_custom_call.1} parent=43 // pred_check
          %p328 = pneg %p43
        $region46: #{tpu_custom_call.1} parent=43 // pred_check_branch
          %330 = sbr.rel (%p328) target = $region48
        $region47: #{tpu_custom_call.1} parent=43 // pred_region
          %332 = dma.done [#allocation4], 512
        $region48: #{tpu_custom_call.1} parent=43 // pred_fallthru
          _
        %s333 = sand.u32 %s27, 1
        %s334 = scalar_lea.sflag [#allocation7], %s333
        %s335 = sand.u32 %s56, 1
        %s336 = smul.addr %s335, 64
        %s337 = scalar_lea.vmem [#allocation6], %s336
        // Predicated region
        $region49: #{tpu_custom_call.1} parent=43 // pred_check
          %p338 = pneg %p69
        $region50: #{tpu_custom_call.1} parent=43 // pred_check_branch
          %340 = sbr.rel (%p338) target = $region52
        $region51: #{tpu_custom_call.1} parent=43 // pred_region
          %342 = dma.done %s334, 1024
        $region52: #{tpu_custom_call.1} parent=43 // pred_fallthru
          _
        %s343 = sand.u32 %s27, 1
        %s344 = scalar_lea.sflag [#allocation7], %s343
        %s345 = sand.u32 %s82, 1
        %s346 = scalar_lea.vmem [#allocation8], %s345
        // Predicated region
        $region53: #{tpu_custom_call.1} parent=43 // pred_check
          %p347 = pneg %p95
        $region54: #{tpu_custom_call.1} parent=43 // pred_check_branch
          %349 = sbr.rel (%p347) target = $region56
        $region55: #{tpu_custom_call.1} parent=43 // pred_region
          %351 = dma.done %s344, 16
        $region56: #{tpu_custom_call.1} parent=43 // pred_fallthru
          _
        %s352 = sand.u32 %s27, 1
        %s353 = scalar_lea.sflag [#allocation10], %s352
        %s354 = sand.u32 %s108, 1
        %s355 = smul.addr %s354, 64
        %s356 = scalar_lea.vmem [#allocation9], %s355
        // Predicated region
        $region57: #{tpu_custom_call.1} parent=43 // pred_check
          %p357 = pneg %p121
        $region58: #{tpu_custom_call.1} parent=43 // pred_check_branch
          %359 = sbr.rel (%p357) target = $region60
        $region59: #{tpu_custom_call.1} parent=43 // pred_region
          %361 = dma.done %s353, 1024
        $region60: #{tpu_custom_call.1} parent=43 // pred_fallthru
          _
        %s362 = sand.u32 %s27, 1
        %s363 = scalar_lea.sflag [#allocation10], %s362
        %s364 = sand.u32 %s134, 1
        %s365 = smul.addr %s364, 64
        %s366 = scalar_lea.vmem [#allocation11], %s365
        // Predicated region
        $region61: #{tpu_custom_call.1} parent=43 // pred_check
          %p367 = pneg %p147
        $region62: #{tpu_custom_call.1} parent=43 // pred_check_branch
          %369 = sbr.rel (%p367) target = $region64
        $region63: #{tpu_custom_call.1} parent=43 // pred_region
          %371 = dma.done %s363, 1024
        $region64: #{tpu_custom_call.1} parent=43 // pred_fallthru
          _
        %p372 = pneg %p43
        %p373 = pneg %p40
        %s374 = sand.u32 %s27, 1
        %s375 = scalar_lea.sflag [#allocation7], %s374
        %s376 = sand.u32 %s56, 1
        %s377 = smul.addr %s376, 64
        %s378 = scalar_lea.vmem [#allocation6], %s377
        %p379 = pneg %p69
        %p380 = pneg %p66
        %s381 = sand.u32 %s27, 1
        %s382 = scalar_lea.sflag [#allocation7], %s381
        %s383 = sand.u32 %s82, 1
        %s384 = scalar_lea.vmem [#allocation8], %s383
        %p385 = pneg %p95
        %p386 = pneg %p92
        %s387 = sand.u32 %s27, 1
        %s388 = scalar_lea.sflag [#allocation10], %s387
        %s389 = sand.u32 %s108, 1
        %s390 = smul.addr %s389, 64
        %s391 = scalar_lea.vmem [#allocation9], %s390
        %p392 = pneg %p121
        %p393 = pneg %p118
        %s394 = sand.u32 %s27, 1
        %s395 = scalar_lea.sflag [#allocation10], %s394
        %s396 = sand.u32 %s134, 1
        %s397 = smul.addr %s396, 64
        %s398 = scalar_lea.vmem [#allocation11], %s397
        %p399 = pneg %p147
        %p400 = pneg %p144
        %p401 = scmp.lt.s32.totalorder %s27, 1
        %s402 = scalar_select %p401, %s27, 1
        %s403 = scalar_lea.vmem %s5, %s402
        %p404 = pneg %p173
        %p405 = pneg %p170
        %p406 = pneg %p199
        %p407 = pneg %p196
        %s408 = sand.u32 %s186, 1
        %s409 = scalar_lea.sflag [#allocation5], %s408
        %s410 = sand.u32 %s186, 1
        %s411 = smul.addr %s410, 8
        %s412 = scalar_lea.vmem [#allocation12], %s411
        %p413 = scmp.lt.s32.totalorder %s27, 1
        %s414 = scalar_select %p413, %s27, 1
        %s415 = scalar_lea.vmem %s5, %s414
        %v417 = vld [vmem:[#allocation3] sm:$0xf]
        %v418 = vld [vmem:[#allocation3 + $0x4] sm:$0xf]
        %v419 = vld [vmem:[#allocation3 + $0x8] sm:$0xf]
        %v420 = vld [vmem:[#allocation3 + $0xc] sm:$0xf]
        %v421 = vld [vmem:[#allocation3 + $0x10] sm:$0xf]
        %v422 = vld [vmem:[#allocation3 + $0x14] sm:$0xf]
        %v423 = vld [vmem:[#allocation3 + $0x18] sm:$0xf]
        %v424 = vld [vmem:[#allocation3 + $0x1c] sm:$0xf]
        %v425 = vld [vmem:[%s337] sm:$0xf]
        %v426 = vld [vmem:[%s337 + $0x4] sm:$0xf]
        %v427 = vld [vmem:[%s337 + $0x8] sm:$0xf]
        %v428 = vld [vmem:[%s337 + $0xc] sm:$0xf]
        %v429 = vld [vmem:[%s337 + $0x10] sm:$0xf]
        %v430 = vld [vmem:[%s337 + $0x14] sm:$0xf]
        %v431 = vld [vmem:[%s337 + $0x18] sm:$0xf]
        %v432 = vld [vmem:[%s337 + $0x1c] sm:$0xf]
        %v433 = vld [vmem:[%s337 + $0x20] sm:$0xf]
        %v434 = vld [vmem:[%s337 + $0x24] sm:$0xf]
        %v435 = vld [vmem:[%s337 + $0x28] sm:$0xf]
        %v436 = vld [vmem:[%s337 + $0x2c] sm:$0xf]
        %v437 = vld [vmem:[%s337 + $0x30] sm:$0xf]
        %v438 = vld [vmem:[%s337 + $0x34] sm:$0xf]
        %v439 = vld [vmem:[%s337 + $0x38] sm:$0xf]
        %v440 = vld [vmem:[%s337 + $0x3c] sm:$0xf]
        %v441 = vld [vmem:[%s346] sm:$0x1]
        %v443 = vperm.slane %v441, 0
        %v453 = vunpack.c.l.b16 %v417
        %v454 = vunpack.c.l.b16 %v418
        %v455 = vunpack.c.l.b16 %v419
        %v456 = vunpack.c.l.b16 %v420
        %v457 = vunpack.c.l.b16 %v421
        %v458 = vunpack.c.l.b16 %v422
        %v459 = vunpack.c.l.b16 %v423
        %v460 = vunpack.c.l.b16 %v424
        %v461 = vpack.c.b16 %v454, %v453
        %v462 = vpack.c.b16 %v456, %v455
        %v463 = vpack.c.b16 %v458, %v457
        %v464 = vpack.c.b16 %v460, %v459
        %v485 = vunpack.c.l.b16 %v425
        %v486 = vunpack.c.l.b16 %v426
        %v487 = vunpack.c.l.b16 %v427
        %v488 = vunpack.c.l.b16 %v428
        %v489 = vunpack.c.l.b16 %v429
        %v490 = vunpack.c.l.b16 %v430
        %v491 = vunpack.c.l.b16 %v431
        %v492 = vunpack.c.l.b16 %v432
        %v493 = vunpack.c.l.b16 %v433
        %v494 = vunpack.c.l.b16 %v434
        %v495 = vunpack.c.l.b16 %v435
        %v496 = vunpack.c.l.b16 %v436
        %v497 = vunpack.c.l.b16 %v437
        %v498 = vunpack.c.l.b16 %v438
        %v499 = vunpack.c.l.b16 %v439
        %v500 = vunpack.c.l.b16 %v440
        %v501 = vpack.c.b16 %v486, %v485
        %v502 = vpack.c.b16 %v488, %v487
        %v503 = vpack.c.b16 %v490, %v489
        %v504 = vpack.c.b16 %v492, %v491
        %v505 = vpack.c.b16 %v494, %v493
        %v506 = vpack.c.b16 %v496, %v495
        %v507 = vpack.c.b16 %v498, %v497
        %v508 = vpack.c.b16 %v500, %v499
        %517 = vmatpush.bf16.msra.mxu0 %v508
        %518 = vmatpush.bf16.msra.mxu0 %v507
        %519 = vmatpush.bf16.msra.mxu0 %v506
        %520 = vmatpush.bf16.msra.mxu0 %v505
        %521 = vmatpush.bf16.msra.mxu0 %v504
        %522 = vmatpush.bf16.msra.mxu0 %v503
        %523 = vmatpush.bf16.msra.mxu0 %v502
        %524 = vmatpush.bf16.msra.mxu0 %v501
        %525 = vmatmul.bf16.gmra.mxu0 %v461
        %v526 = vpop.f32.mrf.mxu0
        %v527 = vadd.f32 %v443, %v526
        %v528 = vpop.f32.mrf.mxu0
        %v529 = vadd.f32 %v443, %v528
        %530 = vmatmul.bf16.gmra.mxu0 %v462
        %v531 = vpop.f32.mrf.mxu0
        %v532 = vadd.f32 %v443, %v531
        %v533 = vpop.f32.mrf.mxu0
        %v534 = vadd.f32 %v443, %v533
        %535 = vmatmul.bf16.gmra.mxu0 %v463
        %v536 = vpop.f32.mrf.mxu0
        %v537 = vadd.f32 %v443, %v536
        %v538 = vpop.f32.mrf.mxu0
        %v539 = vadd.f32 %v443, %v538
        %540 = vmatmul.bf16.gmra.mxu0 %v464
        %v541 = vpop.f32.mrf.mxu0
        %v542 = vadd.f32 %v443, %v541
        %v543 = vpop.f32.mrf.mxu0
        %v544 = vadd.f32 %v443, %v543
        %545 = vdwg.mxu0
        %546 = vst [vmem:[#allocation2] sm:$0xff] %v527
        %547 = vst [vmem:[#allocation2 + $0x8] sm:$0xff] %v529
        %548 = vst [vmem:[#allocation2 + $0x10] sm:$0xff] %v532
        %549 = vst [vmem:[#allocation2 + $0x18] sm:$0xff] %v534
        %550 = vst [vmem:[#allocation2 + $0x20] sm:$0xff] %v537
        %551 = vst [vmem:[#allocation2 + $0x28] sm:$0xff] %v539
        %552 = vst [vmem:[#allocation2 + $0x30] sm:$0xff] %v542
        %553 = vst [vmem:[#allocation2 + $0x38] sm:$0xff] %v544
        %v554 = vld [vmem:[%s356] sm:$0xf]
        %v555 = vld [vmem:[%s356 + $0x4] sm:$0xf]
        %v556 = vld [vmem:[%s356 + $0x8] sm:$0xf]
        %v557 = vld [vmem:[%s356 + $0xc] sm:$0xf]
        %v558 = vld [vmem:[%s356 + $0x10] sm:$0xf]
        %v559 = vld [vmem:[%s356 + $0x14] sm:$0xf]
        %v560 = vld [vmem:[%s356 + $0x18] sm:$0xf]
        %v561 = vld [vmem:[%s356 + $0x1c] sm:$0xf]
        %v562 = vld [vmem:[%s356 + $0x20] sm:$0xf]
        %v563 = vld [vmem:[%s356 + $0x24] sm:$0xf]
        %v564 = vld [vmem:[%s356 + $0x28] sm:$0xf]
        %v565 = vld [vmem:[%s356 + $0x2c] sm:$0xf]
        %v566 = vld [vmem:[%s356 + $0x30] sm:$0xf]
        %v567 = vld [vmem:[%s356 + $0x34] sm:$0xf]
        %v568 = vld [vmem:[%s356 + $0x38] sm:$0xf]
        %v569 = vld [vmem:[%s356 + $0x3c] sm:$0xf]
        %v570 = vlaneseq
        %v571 = vand.u32 %v570, 127
        %vm572 = vcmp.ge.s32.totalorder %v571, 64
        %vm573 = vcmp.lt.s32.totalorder %v571, 96
        %vm574 = vmand %vm572, %vm573
        %p575 = scmp.eq.s32.totalorder %s27, 0
        %s576 = scalar_select %p575, 0, 56
        %s577 = scalar_lea.vmem [#allocation2], %s576
        %v578 = vld [vmem:[%s577] sm:$0xff]
        %v595 = vunpack.c.l.b16 %v554
        %v596 = vunpack.c.l.b16 %v555
        %v597 = vunpack.c.l.b16 %v556
        %v598 = vunpack.c.l.b16 %v557
        %v599 = vunpack.c.l.b16 %v558
        %v600 = vunpack.c.l.b16 %v559
        %v601 = vunpack.c.l.b16 %v560
        %v602 = vunpack.c.l.b16 %v561
        %v603 = vunpack.c.l.b16 %v562
        %v604 = vunpack.c.l.b16 %v563
        %v605 = vunpack.c.l.b16 %v564
        %v606 = vunpack.c.l.b16 %v565
        %v607 = vunpack.c.l.b16 %v566
        %v608 = vunpack.c.l.b16 %v567
        %v609 = vunpack.c.l.b16 %v568
        %v610 = vunpack.c.l.b16 %v569
        %v611 = vpack.c.b16 %v596, %v595
        %v612 = vpack.c.b16 %v598, %v597
        %v613 = vpack.c.b16 %v600, %v599
        %v614 = vpack.c.b16 %v602, %v601
        %v615 = vpack.c.b16 %v604, %v603
        %v616 = vpack.c.b16 %v606, %v605
        %v617 = vpack.c.b16 %v608, %v607
        %v618 = vpack.c.b16 %v610, %v609
        %627 = vmatpush.bf16.msra.mxu0 %v618
        %628 = vmatpush.bf16.msra.mxu0 %v617
        %629 = vmatpush.bf16.msra.mxu0 %v616
        %630 = vmatpush.bf16.msra.mxu0 %v615
        %631 = vmatpush.bf16.msra.mxu0 %v614
        %632 = vmatpush.bf16.msra.mxu0 %v613
        %633 = vmatpush.bf16.msra.mxu0 %v612
        %634 = vmatpush.bf16.msra.mxu0 %v611
        %635 = vmatmul.bf16.gmra.mxu0 0
        %v636 = vpop.f32.mrf.mxu0
        %v637 = vadd.f32 0.0, %v636
        %v638 = vpop.f32.mrf.mxu0
        %639 = vdwg.mxu0
        %v640 = vadd.f32 %v578, %v637
        %v641 = vmul.f32 %v640, 0.5
        %v642 = vsel %vm574, %v640, %v641
        %v643 = vtanh.pop %v642
        %v644 = vadd.f32 %v643, 1.0
        %v645 = vmul.f32 %v644, 0.5
        %v646 = vsel %vm574, %v643, %v645
        %647 = vrot.lane.b32.xlu0 %v646, 64
        %v648 = vpop.permute.xlu0 %647
        %v649 = vmul.f32 %v646, %v648
        %v650 = vmul.f32 %v646, 0.0
        %651 = vrot.lane.b32.xlu0 %v649, 32
        %v652 = vpop.permute.xlu0 %651
        %v653 = vadd.f32 %v650, %v652
        %v654 = vtanh.pop %v653
        %655 = vrot.lane.b32.xlu0 %v654, 64
        %v656 = vpop.permute.xlu0 %655
        %v657 = vmul.f32 %v646, %v656
        %s658 = scalar_select %p575, 8, 48
        %s659 = scalar_lea.vmem [#allocation2], %s658
        %v660 = vld [vmem:[%s659] sm:$0xff]
        %v661 = vpack.c.bf16 %v657, %v657
        %662 = vmatpush.bf16.msra.mxu0 %v618
        %663 = vmatpush.bf16.msra.mxu0 %v617
        %664 = vmatpush.bf16.msra.mxu0 %v616
        %665 = vmatpush.bf16.msra.mxu0 %v615
        %666 = vmatpush.bf16.msra.mxu0 %v614
        %667 = vmatpush.bf16.msra.mxu0 %v613
        %668 = vmatpush.bf16.msra.mxu0 %v612
        %669 = vmatpush.bf16.msra.mxu0 %v611
        %670 = vmatmul.bf16.gmra.mxu0 %v661
        %v671 = vpop.f32.mrf.mxu0
        %v672 = vadd.f32 0.0, %v671
        %v673 = vpop.f32.mrf.mxu0
        %674 = vdwg.mxu0
        %v675 = vadd.f32 %v660, %v672
        %v676 = vmul.f32 %v675, 0.5
        %v677 = vsel %vm574, %v675, %v676
        %v678 = vtanh.pop %v677
        %v679 = vadd.f32 %v678, 1.0
        %v680 = vmul.f32 %v679, 0.5
        %v681 = vsel %vm574, %v678, %v680
        %682 = vrot.lane.b32.xlu0 %v681, 64
        %v683 = vpop.permute.xlu0 %682
        %v684 = vmul.f32 %v681, %v683
        %v685 = vmul.f32 %v681, %v653
        %686 = vrot.lane.b32.xlu0 %v684, 32
        %v687 = vpop.permute.xlu0 %686
        %v688 = vadd.f32 %v685, %v687
        %v689 = vtanh.pop %v688
        %690 = vrot.lane.b32.xlu0 %v689, 64
        %v691 = vpop.permute.xlu0 %690
        %v692 = vmul.f32 %v681, %v691
        %s693 = scalar_select %p575, 16, 40
        %s694 = scalar_lea.vmem [#allocation2], %s693
        %v695 = vld [vmem:[%s694] sm:$0xff]
        %v696 = vpack.c.bf16 %v692, %v692
        %697 = vmatpush.bf16.msra.mxu0 %v618
        %698 = vmatpush.bf16.msra.mxu0 %v617
        %699 = vmatpush.bf16.msra.mxu0 %v616
        %700 = vmatpush.bf16.msra.mxu0 %v615
        %701 = vmatpush.bf16.msra.mxu0 %v614
        %702 = vmatpush.bf16.msra.mxu0 %v613
        %703 = vmatpush.bf16.msra.mxu0 %v612
        %704 = vmatpush.bf16.msra.mxu0 %v611
        %705 = vmatmul.bf16.gmra.mxu0 %v696
        %v706 = vpop.f32.mrf.mxu0
        %v707 = vadd.f32 0.0, %v706
        %v708 = vpop.f32.mrf.mxu0
        %709 = vdwg.mxu0
        %v710 = vadd.f32 %v695, %v707
        %v711 = vmul.f32 %v710, 0.5
        %v712 = vsel %vm574, %v710, %v711
        %v713 = vtanh.pop %v712
        %v714 = vadd.f32 %v713, 1.0
        %v715 = vmul.f32 %v714, 0.5
        %v716 = vsel %vm574, %v713, %v715
        %717 = vrot.lane.b32.xlu0 %v716, 64
        %v718 = vpop.permute.xlu0 %717
        %v719 = vmul.f32 %v716, %v718
        %v720 = vmul.f32 %v716, %v688
        %721 = vrot.lane.b32.xlu0 %v719, 32
        %v722 = vpop.permute.xlu0 %721
        %v723 = vadd.f32 %v720, %v722
        %v724 = vtanh.pop %v723
        %725 = vrot.lane.b32.xlu0 %v724, 64
        %v726 = vpop.permute.xlu0 %725
        %v727 = vmul.f32 %v716, %v726
        %s728 = scalar_select %p575, 24, 32
        %s729 = scalar_lea.vmem [#allocation2], %s728
        %v730 = vld [vmem:[%s729] sm:$0xff]
        %v731 = vpack.c.bf16 %v727, %v727
        %732 = vmatpush.bf16.msra.mxu0 %v618
        %733 = vmatpush.bf16.msra.mxu0 %v617
        %734 = vmatpush.bf16.msra.mxu0 %v616
        %735 = vmatpush.bf16.msra.mxu0 %v615
        %736 = vmatpush.bf16.msra.mxu0 %v614
        %737 = vmatpush.bf16.msra.mxu0 %v613
        %738 = vmatpush.bf16.msra.mxu0 %v612
        %739 = vmatpush.bf16.msra.mxu0 %v611
        %740 = vmatmul.bf16.gmra.mxu0 %v731
        %v741 = vpop.f32.mrf.mxu0
        %v742 = vadd.f32 0.0, %v741
        %v743 = vpop.f32.mrf.mxu0
        %744 = vdwg.mxu0
        %v745 = vadd.f32 %v730, %v742
        %v746 = vmul.f32 %v745, 0.5
        %v747 = vsel %vm574, %v745, %v746
        %v748 = vtanh.pop %v747
        %v749 = vadd.f32 %v748, 1.0
        %v750 = vmul.f32 %v749, 0.5
        %v751 = vsel %vm574, %v748, %v750
        %752 = vrot.lane.b32.xlu0 %v751, 64
        %v753 = vpop.permute.xlu0 %752
        %v754 = vmul.f32 %v751, %v753
        %v755 = vmul.f32 %v751, %v723
        %756 = vrot.lane.b32.xlu0 %v754, 32
        %v757 = vpop.permute.xlu0 %756
        %v758 = vadd.f32 %v755, %v757
        %v759 = vtanh.pop %v758
        %760 = vrot.lane.b32.xlu0 %v759, 64
        %v761 = vpop.permute.xlu0 %760
        %v762 = vmul.f32 %v751, %v761
        %s763 = scalar_select %p575, 32, 24
        %s764 = scalar_lea.vmem [#allocation2], %s763
        %v765 = vld [vmem:[%s764] sm:$0xff]
        %v766 = vpack.c.bf16 %v762, %v762
        %767 = vmatpush.bf16.msra.mxu0 %v618
        %768 = vmatpush.bf16.msra.mxu0 %v617
        %769 = vmatpush.bf16.msra.mxu0 %v616
        %770 = vmatpush.bf16.msra.mxu0 %v615
        %771 = vmatpush.bf16.msra.mxu0 %v614
        %772 = vmatpush.bf16.msra.mxu0 %v613
        %773 = vmatpush.bf16.msra.mxu0 %v612
        %774 = vmatpush.bf16.msra.mxu0 %v611
        %775 = vmatmul.bf16.gmra.mxu0 %v766
        %v776 = vpop.f32.mrf.mxu0
        %v777 = vadd.f32 0.0, %v776
        %v778 = vpop.f32.mrf.mxu0
        %779 = vdwg.mxu0
        %v780 = vadd.f32 %v765, %v777
        %v781 = vmul.f32 %v780, 0.5
        %v782 = vsel %vm574, %v780, %v781
        %v783 = vtanh.pop %v782
        %v784 = vadd.f32 %v783, 1.0
        %v785 = vmul.f32 %v784, 0.5
        %v786 = vsel %vm574, %v783, %v785
        %787 = vrot.lane.b32.xlu0 %v786, 64
        %v788 = vpop.permute.xlu0 %787
        %v789 = vmul.f32 %v786, %v788
        %v790 = vmul.f32 %v786, %v758
        %791 = vrot.lane.b32.xlu0 %v789, 32
        %v792 = vpop.permute.xlu0 %791
        %v793 = vadd.f32 %v790, %v792
        %v794 = vtanh.pop %v793
        %795 = vrot.lane.b32.xlu0 %v794, 64
        %v796 = vpop.permute.xlu0 %795
        %v797 = vmul.f32 %v786, %v796
        %s798 = scalar_select %p575, 40, 16
        %s799 = scalar_lea.vmem [#allocation2], %s798
        %v800 = vld [vmem:[%s799] sm:$0xff]
        %v801 = vpack.c.bf16 %v797, %v797
        %802 = vmatpush.bf16.msra.mxu0 %v618
        %803 = vmatpush.bf16.msra.mxu0 %v617
        %804 = vmatpush.bf16.msra.mxu0 %v616
        %805 = vmatpush.bf16.msra.mxu0 %v615
        %806 = vmatpush.bf16.msra.mxu0 %v614
        %807 = vmatpush.bf16.msra.mxu0 %v613
        %808 = vmatpush.bf16.msra.mxu0 %v612
        %809 = vmatpush.bf16.msra.mxu0 %v611
        %810 = vmatmul.bf16.gmra.mxu0 %v801
        %v811 = vpop.f32.mrf.mxu0
        %v812 = vadd.f32 0.0, %v811
        %v813 = vpop.f32.mrf.mxu0
        %814 = vdwg.mxu0
        %v815 = vadd.f32 %v800, %v812
        %v816 = vmul.f32 %v815, 0.5
        %v817 = vsel %vm574, %v815, %v816
        %v818 = vtanh.pop %v817
        %v819 = vadd.f32 %v818, 1.0
        %v820 = vmul.f32 %v819, 0.5
        %v821 = vsel %vm574, %v818, %v820
        %822 = vrot.lane.b32.xlu0 %v821, 64
        %v823 = vpop.permute.xlu0 %822
        %v824 = vmul.f32 %v821, %v823
        %v825 = vmul.f32 %v821, %v793
        %826 = vrot.lane.b32.xlu0 %v824, 32
        %v827 = vpop.permute.xlu0 %826
        %v828 = vadd.f32 %v825, %v827
        %v829 = vtanh.pop %v828
        %830 = vrot.lane.b32.xlu0 %v829, 64
        %v831 = vpop.permute.xlu0 %830
        %v832 = vmul.f32 %v821, %v831
        %s833 = scalar_select %p575, 48, 8
        %s834 = scalar_lea.vmem [#allocation2], %s833
        %v835 = vld [vmem:[%s834] sm:$0xff]
        %v836 = vpack.c.bf16 %v832, %v832
        %837 = vmatpush.bf16.msra.mxu0 %v618
        %838 = vmatpush.bf16.msra.mxu0 %v617
        %839 = vmatpush.bf16.msra.mxu0 %v616
        %840 = vmatpush.bf16.msra.mxu0 %v615
        %841 = vmatpush.bf16.msra.mxu0 %v614
        %842 = vmatpush.bf16.msra.mxu0 %v613
        %843 = vmatpush.bf16.msra.mxu0 %v612
        %844 = vmatpush.bf16.msra.mxu0 %v611
        %845 = vmatmul.bf16.gmra.mxu0 %v836
        %v846 = vpop.f32.mrf.mxu0
        %v847 = vadd.f32 0.0, %v846
        %v848 = vpop.f32.mrf.mxu0
        %849 = vdwg.mxu0
        %v850 = vadd.f32 %v835, %v847
        %v851 = vmul.f32 %v850, 0.5
        %v852 = vsel %vm574, %v850, %v851
        %v853 = vtanh.pop %v852
        %v854 = vadd.f32 %v853, 1.0
        %v855 = vmul.f32 %v854, 0.5
        %v856 = vsel %vm574, %v853, %v855
        %857 = vrot.lane.b32.xlu0 %v856, 64
        %v858 = vpop.permute.xlu0 %857
        %v859 = vmul.f32 %v856, %v858
        %v860 = vmul.f32 %v856, %v828
        %861 = vrot.lane.b32.xlu0 %v859, 32
        %v862 = vpop.permute.xlu0 %861
        %v863 = vadd.f32 %v860, %v862
        %v864 = vtanh.pop %v863
        %865 = vrot.lane.b32.xlu0 %v864, 64
        %v866 = vpop.permute.xlu0 %865
        %v867 = vmul.f32 %v856, %v866
        %s868 = scalar_select %p575, 56, 0
        %s869 = scalar_lea.vmem [#allocation2], %s868
        %v870 = vld [vmem:[%s869] sm:$0xff]
        %v871 = vpack.c.bf16 %v867, %v867
        %872 = vmatpush.bf16.msra.mxu0 %v618
        %873 = vmatpush.bf16.msra.mxu0 %v617
        %874 = vmatpush.bf16.msra.mxu0 %v616
        %875 = vmatpush.bf16.msra.mxu0 %v615
        %876 = vmatpush.bf16.msra.mxu0 %v614
        %877 = vmatpush.bf16.msra.mxu0 %v613
        %878 = vmatpush.bf16.msra.mxu0 %v612
        %879 = vmatpush.bf16.msra.mxu0 %v611
        %880 = vmatmul.bf16.gmra.mxu0 %v871
        %v881 = vpop.f32.mrf.mxu0
        %v882 = vadd.f32 0.0, %v881
        %v883 = vpop.f32.mrf.mxu0
        %884 = vdwg.mxu0
        %v885 = vadd.f32 %v870, %v882
        %v886 = vmul.f32 %v885, 0.5
        %v887 = vsel %vm574, %v885, %v886
        %v888 = vtanh.pop %v887
        %v889 = vadd.f32 %v888, 1.0
        %v890 = vmul.f32 %v889, 0.5
        %v891 = vsel %vm574, %v888, %v890
        %892 = vrot.lane.b32.xlu0 %v891, 64
        %v893 = vpop.permute.xlu0 %892
        %v894 = vmul.f32 %v891, %v893
        %v895 = vmul.f32 %v891, %v863
        %896 = vrot.lane.b32.xlu0 %v894, 32
        %v897 = vpop.permute.xlu0 %896
        %v898 = vadd.f32 %v895, %v897
        %v899 = vtanh.pop %v898
        %900 = vrot.lane.b32.xlu0 %v899, 64
        %v901 = vpop.permute.xlu0 %900
        %v902 = vmul.f32 %v891, %v901
        %v903 = vpack.c.bf16 %v902, %v902
        %v904 = vld [vmem:[%s366] sm:$0xf]
        %v905 = vld [vmem:[%s366 + $0x4] sm:$0xf]
        %v906 = vld [vmem:[%s366 + $0x8] sm:$0xf]
        %v907 = vld [vmem:[%s366 + $0xc] sm:$0xf]
        %v908 = vld [vmem:[%s366 + $0x10] sm:$0xf]
        %v909 = vld [vmem:[%s366 + $0x14] sm:$0xf]
        %v910 = vld [vmem:[%s366 + $0x18] sm:$0xf]
        %v911 = vld [vmem:[%s366 + $0x1c] sm:$0xf]
        %v912 = vld [vmem:[%s366 + $0x20] sm:$0xf]
        %v913 = vld [vmem:[%s366 + $0x24] sm:$0xf]
        %v914 = vld [vmem:[%s366 + $0x28] sm:$0xf]
        %v915 = vld [vmem:[%s366 + $0x2c] sm:$0xf]
        %v916 = vld [vmem:[%s366 + $0x30] sm:$0xf]
        %v917 = vld [vmem:[%s366 + $0x34] sm:$0xf]
        %v918 = vld [vmem:[%s366 + $0x38] sm:$0xf]
        %v919 = vld [vmem:[%s366 + $0x3c] sm:$0xf]
        %v920 = vld [vmem:[%s415] sm:$0x1]
        %v922 = vperm.slane %v920, 0
        %v940 = vunpack.c.l.b16 %v904
        %v941 = vunpack.c.l.b16 %v905
        %v942 = vunpack.c.l.b16 %v906
        %v943 = vunpack.c.l.b16 %v907
        %v944 = vunpack.c.l.b16 %v908
        %v945 = vunpack.c.l.b16 %v909
        %v946 = vunpack.c.l.b16 %v910
        %v947 = vunpack.c.l.b16 %v911
        %v948 = vunpack.c.l.b16 %v912
        %v949 = vunpack.c.l.b16 %v913
        %v950 = vunpack.c.l.b16 %v914
        %v951 = vunpack.c.l.b16 %v915
        %v952 = vunpack.c.l.b16 %v916
        %v953 = vunpack.c.l.b16 %v917
        %v954 = vunpack.c.l.b16 %v918
        %v955 = vunpack.c.l.b16 %v919
        %v956 = vpack.c.b16 %v941, %v940
        %v957 = vpack.c.b16 %v943, %v942
        %v958 = vpack.c.b16 %v945, %v944
        %v959 = vpack.c.b16 %v947, %v946
        %v960 = vpack.c.b16 %v949, %v948
        %v961 = vpack.c.b16 %v951, %v950
        %v962 = vpack.c.b16 %v953, %v952
        %v963 = vpack.c.b16 %v955, %v954
        %972 = vmatpush.bf16.msra.mxu0 %v963
        %973 = vmatpush.bf16.msra.mxu0 %v962
        %974 = vmatpush.bf16.msra.mxu0 %v961
        %975 = vmatpush.bf16.msra.mxu0 %v960
        %976 = vmatpush.bf16.msra.mxu0 %v959
        %977 = vmatpush.bf16.msra.mxu0 %v958
        %978 = vmatpush.bf16.msra.mxu0 %v957
        %979 = vmatpush.bf16.msra.mxu0 %v956
        %980 = vmatmul.bf16.gmra.mxu0 %v903
        %v981 = vpop.f32.mrf.mxu0
        %v982 = vadd.f32 %v922, %v981
        %v983 = vpop.f32.mrf.mxu0
        %984 = vdwg.mxu0
        %985 = vst [vmem:[%s412] sm:$0xff] %v982
        %s986 = sand.u32 %s186, 1
        %s987 = scalar_lea.sflag [#allocation5], %s986
        %s988 = sand.u32 %s186, 1
        %s989 = smul.addr %s988, 8
        %s990 = scalar_lea.vmem [#allocation12], %s989
        // Predicated region
        $region65: #{tpu_custom_call.1} parent=43 // pred_check
          %p991 = pneg %p196
        $region66: #{tpu_custom_call.1} parent=43 // pred_check_branch
          %993 = sbr.rel (%p991) target = $region68
        $region67: #{tpu_custom_call.1} parent=43 // pred_region
          %995 = vsyncadd %s987, 0
          %s996 = smul.addr %s27, 8
          %s997 = scalar_lea.hbm %s6, %s996
          %s999 = sshll.u32 %s990, 4
          %s1000 = int_to_ptr.vmem [resolvable:$true] %s999
          %s1001 = sshll.u32 %s997, 4
          %s1002 = int_to_ptr.hbm [resolvable:$true] %s1001
          %1004 = dma.vmem_to_hbm [thread:$0]  %s1000, 128, %s1002, %s987
        $region68: #{tpu_custom_call.1} parent=43 // pred_fallthru
          _
      $region44: #{tpu_custom_call.1} parent=5 // pred_fallthru
        _
      %p1005 = scmp.le.s32.totalorder 2, %s22
      // Predicated region
      $region69: #{tpu_custom_call.1} parent=5 // pred_check
        %p1006 = pneg %p1005
      $region70: #{tpu_custom_call.1} parent=5 // pred_check_branch
        %1008 = sbr.rel (%p1006) target = $region72
      $region71: #{tpu_custom_call.1} parent=5 // pred_region
        %s1009 = ssub.s32 %s22, 2
        // Predicated region
        $region73: #{tpu_custom_call.1} parent=71 // pred_check
          %p1010 = pneg %p202
        $region74: #{tpu_custom_call.1} parent=71 // pred_check_branch
          %1012 = sbr.rel (%p1010) target = $region76
        $region75: #{tpu_custom_call.1} parent=71 // pred_region
          %s1013 = sand.u32 %s187, 1
          %s1014 = scalar_lea.sflag [#allocation5], %s1013
          %s1015 = sand.u32 %s187, 1
          %s1016 = smul.addr %s1015, 8
          %s1017 = scalar_lea.vmem [#allocation12], %s1016
          %1019 = dma.done %s1014, 128
        $region76: #{tpu_custom_call.1} parent=71 // pred_fallthru
          _
      $region72: #{tpu_custom_call.1} parent=5 // pred_fallthru
        _
    $region6: #{tpu_custom_call.1} parent=1 // loop_footer
      %s26 = sadd.s32 1, %s22
    $region7: #{tpu_custom_call.1} parent=1 // loop_footer_branch
      %21 = sbr.rel target = $region3
    $region8: #{tpu_custom_call.1} parent=1 // loop_exit
      _
    %1020 = vsyncpa [#allocation4], 1
    %s1021 = scalar_lea.sflag [#allocation4], 1
    %1022 = vsyncpa %s1021, 1
    %1023 = vsyncpa [#allocation7], 1
    %s1024 = scalar_lea.sflag [#allocation7], 1
    %1025 = vsyncpa %s1024, 1
    %1026 = vsyncpa [#allocation10], 1
    %s1027 = scalar_lea.sflag [#allocation10], 1
    %1028 = vsyncpa %s1027, 1
    %1029 = vsyncpa [#allocation5], 1
    %s1030 = scalar_lea.sflag [#allocation5], 1
    %1031 = vsyncpa %s1030, 1

</llo_original>
